<compile_context>
chip_gen: v5e
topology: v5e:2x2
jax: 0.10.0
libtpu: 0.0.40
codegen_flags: <defaults>
</compile_context>

<pallas_src>
import numpy as np
import jax
import jax.numpy as jnp
from jax.experimental import pallas as pl
from jax.experimental.pallas import tpu as pltpu


def _round_up(x, m):
    return ((x + m - 1) // m) * m


def _cdiv(a, b):
    return (a + b - 1) // b


def _maxpool_time(x, k):
    """PyTorch nn.MaxPool1d(kernel_size=k, stride=k, ceil_mode=True) over axis=1 (time).

    Works for (B, L) and (B, L, C); avoids the transpose->pool->transpose round-trip of
    the PyTorch formulation while producing the identical time-major flattening order.
    """
    L = x.shape[1]
    Lp = _round_up(L, k)
    pad = [(0, 0)] * x.ndim
    pad[1] = (0, Lp - L)
    xp = jnp.pad(x, pad, constant_values=-jnp.inf)
    new_shape = (x.shape[0], Lp // k, k) + x.shape[2:]
    return xp.reshape(new_shape).max(axis=2)


def _make_mlp_kernel(n_groups, n_rest):
    """Split-input MLP.

    Layer 0:  h = sum_g x_g @ W0_g + b0             (no activation)
    Hidden :  h = ReLU(h @ W_i + b_i)               (one per mlp_units entry)
    Output :  theta = h @ W_out + b_out             (stored bf16, lane-dense)

    Dropout is identity (p=0 / eval mode).  All accumulation / bias / ReLU in f32.
    """
    def kernel(*refs):
        x_refs = refs[:n_groups]
        w0_refs = refs[n_groups:2 * n_groups]
        b0_ref = refs[2 * n_groups]
        rest = refs[2 * n_groups + 1:-1]
        theta_ref = refs[-1]

        h = jnp.dot(x_refs[0][...], w0_refs[0][...],
                    preferred_element_type=jnp.float32)
        for g in range(1, n_groups):
            h = h + jnp.dot(x_refs[g][...], w0_refs[g][...],
                            preferred_element_type=jnp.float32)
        h = h + b0_ref[...]

        for i in range(n_rest):
            a = h.astype(jnp.bfloat16)
            h = jnp.dot(a, rest[2 * i][...],
                        preferred_element_type=jnp.float32) + rest[2 * i + 1][...]
            if i < n_rest - 1:                   # ReLU on mlp_units layers, not the output layer
                h = jnp.maximum(h, 0.0)
        theta_ref[...] = h.astype(theta_ref.dtype)
    return kernel


class NHITSBlockPallas:
    def __init__(self, input_size, h, mlp_units, futr_input_size, hist_input_size,
                 stat_input_size, n_pool_kernel_size, key,
                 pooling_mode="MaxPool1d", activation="ReLU", dropout_prob=0.0):
        assert pooling_mode == "MaxPool1d"       # TODO(synk): AvgPool1d variant not implemented
        assert activation == "ReLU"              # TODO(synk): other ACTIVATIONS not implemented
        assert dropout_prob == 0.0               # TODO(synk): training-mode (stochastic) dropout not implemented
        for a, b in zip(mlp_units[:-1], mlp_units[1:]):
            assert a[1] == b[0], "mlp_units chain must satisfy out_i == in_{i+1}"

        self.input_size = input_size
        self.h = h
        self.n_theta = input_size + h            # IdentityBasis (no knot interpolation)
        self.k = n_pool_kernel_size
        self.futr_input_size = futr_input_size
        self.hist_input_size = hist_input_size
        self.stat_input_size = stat_input_size

        pooled_hist = int(np.ceil(input_size / n_pool_kernel_size))
        pooled_futr = int(np.ceil((input_size + h) / n_pool_kernel_size))
        self.pooled_hist = pooled_hist
        self.pooled_futr = pooled_futr

        # Feature groups of the MLP input, kept separate so the concatenated x never
        # materializes in HBM (layer 0 is a sum of per-group matmuls).
        group_widths = [pooled_hist]
        if hist_input_size > 0:
            group_widths.append(hist_input_size * pooled_hist)
        if futr_input_size > 0:
            group_widths.append(futr_input_size * pooled_futr)
        if stat_input_size > 0:
            group_widths.append(stat_input_size)
        self.group_widths = group_widths
        self.n_groups = len(group_widths)
        self.concat_size = sum(group_widths)

        # Linear (in, out) dims, mirroring the PyTorch construction exactly.
        layer_dims = [(self.concat_size, mlp_units[0][0])]
        layer_dims += [(u_in, u_out) for (u_in, u_out) in mlp_units]
        layer_dims += [(mlp_units[-1][1], self.n_theta)]
        self.layer_dims = layer_dims
        self.n_layers = len(layer_dims)
        self.n_rest = self.n_layers - 1

        # Lane-pad hidden / theta widths to multiples of 128 (zero padding keeps math exact).
        self.hidden0_pad = _round_up(layer_dims[0][1], 128)
        self.padded_rest = [(_round_up(fi, 128), _round_up(fo, 128)) for fi, fo in layer_dims[1:]]
        self.n_theta_pad = self.padded_rest[-1][1]

        # Deterministic synthetic parameters; weights pre-cast to bf16 once, biases f32.
        ks = jax.random.split(key, 2 * self.n_layers)
        fi0, fo0 = layer_dims[0]
        w0 = jax.random.normal(ks[0], (fi0, fo0), jnp.float32) / np.sqrt(fi0)
        b0 = jax.random.normal(ks[1], (1, fo0), jnp.float32) * 0.01
        w0_pad = jnp.zeros((fi0, self.hidden0_pad), jnp.float32).at[:, :fo0].set(w0)
        w0_pad = w0_pad.astype(jnp.bfloat16)
        offs = np.cumsum([0] + group_widths)
        self.w0_groups = [w0_pad[int(offs[g]):int(offs[g + 1])] for g in range(self.n_groups)]
        self.b0 = jnp.zeros((1, self.hidden0_pad), jnp.float32).at[:, :fo0].set(b0)

        self.rest_params = []
        for idx, ((fi, fo), (pi, po)) in enumerate(zip(layer_dims[1:], self.padded_rest), start=1):
            w = jax.random.normal(ks[2 * idx], (fi, fo), jnp.float32) / np.sqrt(fi)
            b = jax.random.normal(ks[2 * idx + 1], (1, fo), jnp.float32) * 0.01
            w_pad = jnp.zeros((pi, po), jnp.float32).at[:fi, :fo].set(w).astype(jnp.bfloat16)
            b_pad = jnp.zeros((1, po), jnp.float32).at[:, :fo].set(b)
            self.rest_params += [w_pad, b_pad]

        self._resident_single = None   # cached: does this JAX accept pl.Buffered(1)?

    # ---------------- VMEM budgeting / tiling ----------------

    @staticmethod
    def _vmem_budget_bytes():
        # Generation-aware cap (64 MiB/TensorCore on v7x, 128 MiB on v5e/v6e) minus
        # headroom for compiler-internal scratch.
        try:
            cap = int(pltpu.get_tpu_info().vmem_capacity_bytes)
        except Exception:
            cap = 64 * 2 ** 20
        return max(16 * 2 ** 20, cap - 12 * 2 ** 20)

    def _vmem_needed_bytes(self, tile_b):
        bytes_x = 2 * sum(tile_b * w * 2 for w in self.group_widths)          # double-buffered bf16 tiles
        bytes_w0 = sum(w * self.hidden0_pad * 2 for w in self.group_widths)   # single-buffered bf16
        bytes_b0 = self.hidden0_pad * 4
        bytes_wb = sum(pi * po * 2 + po * 4 for pi, po in self.padded_rest)   # single-buffered
        bytes_out = 2 * tile_b * self.n_theta_pad * 2                         # double-buffered bf16
        max_po = max([self.hidden0_pad] + [po for _, po in self.padded_rest])
        bytes_inter = 3 * tile_b * max_po * 4                                 # f32 activations / regalloc slack
        return bytes_x + bytes_w0 + bytes_b0 + bytes_wb + bytes_out + bytes_inter

    def _choose_tile(self, B, budget):
        cap_rows = 1024                          # large tiles amortize the ~0.35us/step overhead
        n_tiles = _cdiv(B, cap_rows)
        if B > 16:
            n_tiles = max(n_tiles, 2)            # >=2 grid steps so both v7x TensorCores get work
        tile_b = _round_up(_cdiv(B, n_tiles), 16)  # multiple of 16: dense bf16 sublane packing
        while tile_b > 16 and self._vmem_needed_bytes(tile_b) > budget:
            tile_b = _round_up(tile_b // 2, 16)
        return tile_b

    # ---------------- the Pallas MLP ----------------

    def _pallas_mlp(self, x_groups, tile_b, vmem_budget, resident_single_buffer):
        b_rows = x_groups[0].shape[0]
        grid = (b_rows // tile_b,)
        res_kwargs = {"pipeline_mode": pl.Buffered(1)} if resident_single_buffer else {}

        in_specs = [pl.BlockSpec((tile_b, w), lambda i: (i, 0)) for w in self.group_widths]
        in_specs += [pl.BlockSpec((w, self.hidden0_pad), lambda i: (0, 0), **res_kwargs)
                     for w in self.group_widths]
        in_specs.append(pl.BlockSpec((1, self.hidden0_pad), lambda i: (0, 0), **res_kwargs))
        for (pi, po) in self.padded_rest:
            in_specs.append(pl.BlockSpec((pi, po), lambda i: (0, 0), **res_kwargs))
            in_specs.append(pl.BlockSpec((1, po), lambda i: (0, 0), **res_kwargs))
        out_specs = pl.BlockSpec((tile_b, self.n_theta_pad), lambda i: (i, 0))

        vmem_needed = self._vmem_needed_bytes(tile_b)
        vmem_limit = int(min(vmem_budget, max(32 * 2 ** 20, int(1.25 * vmem_needed))))

        # Advisory cost estimate uses the *unpadded* layer widths.
        flops = int(2 * b_rows * sum(fi * fo for fi, fo in self.layer_dims))
        bytes_accessed = int(b_rows * self.concat_size * 2
                             + sum(fi * fo * 2 + fo * 4 for fi, fo in self.layer_dims)
                             + b_rows * self.n_theta_pad * 2)

        theta = pl.pallas_call(
            _make_mlp_kernel(self.n_groups, self.n_rest),
            out_shape=jax.ShapeDtypeStruct((b_rows, self.n_theta_pad), jnp.bfloat16),
            grid=grid,
            in_specs=in_specs,
            out_specs=out_specs,
            compiler_params=pltpu.CompilerParams(
                dimension_semantics=("parallel",),       # megacore sharding on v7x
                vmem_limit_bytes=vmem_limit),
            cost_estimate=pl.CostEstimate(
                flops=flops, transcendentals=0, bytes_accessed=bytes_accessed),
        )(*x_groups, *self.w0_groups, self.b0, *self.rest_params)
        return theta

    # ---------------- forward ----------------

    def __call__(self, insample_y, futr_exog, hist_exog, stat_exog):
        k = self.k
        B = insample_y.shape[0]

        # Pool directly over the time axis and cast to bf16 in the same fusion;
        # feature groups stay separate (no concatenated x in HBM).
        groups = [_maxpool_time(insample_y, k).astype(jnp.bfloat16)]
        if self.hist_input_size > 0:
            he = _maxpool_time(hist_exog, k)                       # (B, pooled_hist, C_h)
            groups.append(he.reshape(B, -1).astype(jnp.bfloat16))
        if self.futr_input_size > 0:
            fe = _maxpool_time(futr_exog, k)                       # (B, pooled_futr, C_f)
            groups.append(fe.reshape(B, -1).astype(jnp.bfloat16))
        if self.stat_input_size > 0:
            groups.append(stat_exog.reshape(B, -1).astype(jnp.bfloat16))

        budget = self._vmem_budget_bytes()
        tile_b = self._choose_tile(B, budget)
        b_rows = _round_up(B, tile_b)
        if b_rows != B:
            groups = [jnp.pad(g, ((0, b_rows - B), (0, 0))) for g in groups]

        if self._resident_single is None:
            try:
                theta = self._pallas_mlp(groups, tile_b, budget, True)
                jax.block_until_ready(theta)
                self._resident_single = True
            except Exception:
                # TODO(synk): drop fallback once pl.Buffered(1) support is confirmed everywhere.
                self._resident_single = False
                theta = self._pallas_mlp(groups, tile_b, budget, False)
        else:
            theta = self._pallas_mlp(groups, tile_b, budget, self._resident_single)

        # IdentityBasis split + un-padding in the wrapper (kernel store stays lane-dense).
        backcast = theta[:B, :self.input_size].astype(jnp.float32)
        forecast = theta[:B, self.input_size:self.n_theta].astype(jnp.float32)
        return backcast, forecast


def _reference(block, insample_y, futr_exog, hist_exog, stat_exog):
    """Pure-JAX f32 reference (same bf16 weights) for a tolerance check."""
    B = insample_y.shape[0]
    feats = [_maxpool_time(insample_y, block.k)]
    if block.hist_input_size > 0:
        feats.append(_maxpool_time(hist_exog, block.k).reshape(B, -1))
    if block.futr_input_size > 0:
        feats.append(_maxpool_time(futr_exog, block.k).reshape(B, -1))
    if block.stat_input_size > 0:
        feats.append(stat_exog.reshape(B, -1))
    x = jnp.concatenate(feats, axis=1).astype(jnp.float32)
    w0 = jnp.concatenate([w.astype(jnp.float32) for w in block.w0_groups], axis=0)
    h = x @ w0 + block.b0
    for i in range(block.n_rest):
        h = h @ block.rest_params[2 * i].astype(jnp.float32) + block.rest_params[2 * i + 1]
        if i < block.n_rest - 1:
            h = jnp.maximum(h, 0.0)
    return h[:, :block.input_size], h[:, block.input_size:block.n_theta]


if __name__ == "__main__":
    key = jax.random.PRNGKey(0)
    k_param, k_y, k_f, k_hx, k_s = jax.random.split(key, 5)

    B = 2
    input_size = 16
    h = 8
    hist_feats = 2
    futr_feats = 1
    stat_feats = 4
    n_pool_kernel_size = 2
    mlp_units = [[32, 32], [32, 32]]

    block = NHITSBlockPallas(
        input_size=input_size, h=h, mlp_units=mlp_units,
        futr_input_size=futr_feats, hist_input_size=hist_feats,
        stat_input_size=stat_feats, n_pool_kernel_size=n_pool_kernel_size,
        key=k_param)

    insample_y = jax.random.normal(k_y, (B, input_size), jnp.float32)
    futr_exog = jax.random.normal(k_f, (B, input_size + h, futr_feats), jnp.float32)
    hist_exog = jax.random.normal(k_hx, (B, input_size, hist_feats), jnp.float32)
    stat_exog = jax.random.normal(k_s, (B, stat_feats), jnp.float32)

    backcast, forecast = block(insample_y, futr_exog, hist_exog, stat_exog)
    jax.block_until_ready((backcast, forecast))
    assert backcast.shape == (B, input_size) and forecast.shape == (B, h)
    assert bool(jnp.all(jnp.isfinite(backcast))) and bool(jnp.all(jnp.isfinite(forecast)))

    # bf16-matmul tolerance check against a pure-JAX f32 reference.
    ref_b, ref_f = _reference(block, insample_y, futr_exog, hist_exog, stat_exog)
    assert bool(jnp.allclose(backcast, ref_b, rtol=1e-1, atol=1e-1))
    assert bool(jnp.allclose(forecast, ref_f, rtol=1e-1, atol=1e-1))
    print("KERNEL_OK")
</pallas_src>

<mosaic_0001>
module attributes {stable_mosaic.version = 11 : i64} {
  func.func @kernel(%arg0: i32, %arg1: memref<16x8xbf16, #tpu.memory_space<vmem>>, %arg2: memref<16x16xbf16, #tpu.memory_space<vmem>>, %arg3: memref<16x12xbf16, #tpu.memory_space<vmem>>, %arg4: memref<16x4xbf16, #tpu.memory_space<vmem>>, %arg5: memref<8x128xbf16, #tpu.memory_space<vmem>>, %arg6: memref<16x128xbf16, #tpu.memory_space<vmem>>, %arg7: memref<12x128xbf16, #tpu.memory_space<vmem>>, %arg8: memref<4x128xbf16, #tpu.memory_space<vmem>>, %arg9: memref<1x128xf32, #tpu.memory_space<vmem>>, %arg10: memref<128x128xbf16, #tpu.memory_space<vmem>>, %arg11: memref<1x128xf32, #tpu.memory_space<vmem>>, %arg12: memref<128x128xbf16, #tpu.memory_space<vmem>>, %arg13: memref<1x128xf32, #tpu.memory_space<vmem>>, %arg14: memref<128x128xbf16, #tpu.memory_space<vmem>>, %arg15: memref<1x128xf32, #tpu.memory_space<vmem>>, %arg16: memref<16x128xbf16, #tpu.memory_space<vmem>>) attributes {dimension_semantics = [#tpu.dimension_semantics<parallel>], iteration_bounds = array<i64: 1>, scalar_prefetch = 0 : i64, scratch_operands = 0 : i64, tpu.core_type = #tpu.core_type<tc>, window_params = [{transform_indices = @transform_0, window_bounds = array<i64: 16, 8>}, {transform_indices = @transform_1, window_bounds = array<i64: 16, 16>}, {transform_indices = @transform_2, window_bounds = array<i64: 16, 12>}, {transform_indices = @transform_3, window_bounds = array<i64: 16, 4>}, {pipeline_mode = #tpu.pipeline_mode<synchronous>, transform_indices = @transform_4, window_bounds = array<i64: 8, 128>}, {pipeline_mode = #tpu.pipeline_mode<synchronous>, transform_indices = @transform_5, window_bounds = array<i64: 16, 128>}, {pipeline_mode = #tpu.pipeline_mode<synchronous>, transform_indices = @transform_6, window_bounds = array<i64: 12, 128>}, {pipeline_mode = #tpu.pipeline_mode<synchronous>, transform_indices = @transform_7, window_bounds = array<i64: 4, 128>}, {pipeline_mode = #tpu.pipeline_mode<synchronous>, transform_indices = @transform_8, window_bounds = array<i64: 1, 128>}, {pipeline_mode = #tpu.pipeline_mode<synchronous>, transform_indices = @transform_9, window_bounds = array<i64: 128, 128>}, {pipeline_mode = #tpu.pipeline_mode<synchronous>, transform_indices = @transform_10, window_bounds = array<i64: 1, 128>}, {pipeline_mode = #tpu.pipeline_mode<synchronous>, transform_indices = @transform_11, window_bounds = array<i64: 128, 128>}, {pipeline_mode = #tpu.pipeline_mode<synchronous>, transform_indices = @transform_12, window_bounds = array<i64: 1, 128>}, {pipeline_mode = #tpu.pipeline_mode<synchronous>, transform_indices = @transform_13, window_bounds = array<i64: 128, 128>}, {pipeline_mode = #tpu.pipeline_mode<synchronous>, transform_indices = @transform_14, window_bounds = array<i64: 1, 128>}, {transform_indices = @transform_15, window_bounds = array<i64: 16, 128>}]} {
    %c0 = arith.constant 0 : index
    %c0_0 = arith.constant 0 : index
    %0 = vector.load %arg1[%c0, %c0_0] : memref<16x8xbf16, #tpu.memory_space<vmem>>, vector<16x8xbf16>
    %c0_1 = arith.constant 0 : index
    %c0_2 = arith.constant 0 : index
    %1 = vector.load %arg5[%c0_1, %c0_2] : memref<8x128xbf16, #tpu.memory_space<vmem>>, vector<8x128xbf16>
    %cst = arith.constant dense<0.000000e+00> : vector<16x128xf32>
    %2 = tpu.matmul %0, %1, %cst {dimension_numbers = #tpu.dot_dimension_numbers<[1], [0], [0], [1], [0, 0, 1, 1], [], []>} : vector<16x8xbf16>, vector<8x128xbf16>, vector<16x128xf32> -> vector<16x128xf32>
    %c0_3 = arith.constant 0 : index
    %c0_4 = arith.constant 0 : index
    %3 = vector.load %arg2[%c0_3, %c0_4] : memref<16x16xbf16, #tpu.memory_space<vmem>>, vector<16x16xbf16>
    %c0_5 = arith.constant 0 : index
    %c0_6 = arith.constant 0 : index
    %4 = vector.load %arg6[%c0_5, %c0_6] : memref<16x128xbf16, #tpu.memory_space<vmem>>, vector<16x128xbf16>
    %cst_7 = arith.constant dense<0.000000e+00> : vector<16x128xf32>
    %5 = tpu.matmul %3, %4, %cst_7 {dimension_numbers = #tpu.dot_dimension_numbers<[1], [0], [0], [1], [0, 0, 1, 1], [], []>} : vector<16x16xbf16>, vector<16x128xbf16>, vector<16x128xf32> -> vector<16x128xf32>
    %6 = arith.addf %2, %5 : vector<16x128xf32>
    %c0_8 = arith.constant 0 : index
    %c0_9 = arith.constant 0 : index
    %7 = vector.load %arg3[%c0_8, %c0_9] : memref<16x12xbf16, #tpu.memory_space<vmem>>, vector<16x12xbf16>
    %c0_10 = arith.constant 0 : index
    %c0_11 = arith.constant 0 : index
    %8 = vector.load %arg7[%c0_10, %c0_11] : memref<12x128xbf16, #tpu.memory_space<vmem>>, vector<12x128xbf16>
    %cst_12 = arith.constant dense<0.000000e+00> : vector<16x128xf32>
    %9 = tpu.matmul %7, %8, %cst_12 {dimension_numbers = #tpu.dot_dimension_numbers<[1], [0], [0], [1], [0, 0, 1, 1], [], []>} : vector<16x12xbf16>, vector<12x128xbf16>, vector<16x128xf32> -> vector<16x128xf32>
    %10 = arith.addf %6, %9 : vector<16x128xf32>
    %c0_13 = arith.constant 0 : index
    %c0_14 = arith.constant 0 : index
    %11 = vector.load %arg4[%c0_13, %c0_14] : memref<16x4xbf16, #tpu.memory_space<vmem>>, vector<16x4xbf16>
    %c0_15 = arith.constant 0 : index
    %c0_16 = arith.constant 0 : index
    %12 = vector.load %arg8[%c0_15, %c0_16] : memref<4x128xbf16, #tpu.memory_space<vmem>>, vector<4x128xbf16>
    %cst_17 = arith.constant dense<0.000000e+00> : vector<16x128xf32>
    %13 = tpu.matmul %11, %12, %cst_17 {dimension_numbers = #tpu.dot_dimension_numbers<[1], [0], [0], [1], [0, 0, 1, 1], [], []>} : vector<16x4xbf16>, vector<4x128xbf16>, vector<16x128xf32> -> vector<16x128xf32>
    %14 = arith.addf %10, %13 : vector<16x128xf32>
    %c0_18 = arith.constant 0 : index
    %c0_19 = arith.constant 0 : index
    %15 = vector.load %arg9[%c0_18, %c0_19] : memref<1x128xf32, #tpu.memory_space<vmem>>, vector<1x128xf32>
    %16 = vector.broadcast %15 : vector<1x128xf32> to vector<16x128xf32>
    %17 = arith.addf %14, %16 : vector<16x128xf32>
    %18 = arith.truncf %17 : vector<16x128xf32> to vector<16x128xbf16>
    %c0_20 = arith.constant 0 : index
    %c0_21 = arith.constant 0 : index
    %19 = vector.load %arg10[%c0_20, %c0_21] : memref<128x128xbf16, #tpu.memory_space<vmem>>, vector<128x128xbf16>
    %cst_22 = arith.constant dense<0.000000e+00> : vector<16x128xf32>
    %20 = tpu.matmul %18, %19, %cst_22 {dimension_numbers = #tpu.dot_dimension_numbers<[1], [0], [0], [1], [0, 0, 1, 1], [], []>} : vector<16x128xbf16>, vector<128x128xbf16>, vector<16x128xf32> -> vector<16x128xf32>
    %c0_23 = arith.constant 0 : index
    %c0_24 = arith.constant 0 : index
    %21 = vector.load %arg11[%c0_23, %c0_24] : memref<1x128xf32, #tpu.memory_space<vmem>>, vector<1x128xf32>
    %22 = vector.broadcast %21 : vector<1x128xf32> to vector<16x128xf32>
    %23 = arith.addf %20, %22 : vector<16x128xf32>
    %cst_25 = arith.constant 0.000000e+00 : f32
    %24 = vector.broadcast %cst_25 : f32 to vector<16x128xf32>
    %25 = arith.maximumf %23, %24 : vector<16x128xf32>
    %26 = arith.truncf %25 : vector<16x128xf32> to vector<16x128xbf16>
    %c0_26 = arith.constant 0 : index
    %c0_27 = arith.constant 0 : index
    %27 = vector.load %arg12[%c0_26, %c0_27] : memref<128x128xbf16, #tpu.memory_space<vmem>>, vector<128x128xbf16>
    %cst_28 = arith.constant dense<0.000000e+00> : vector<16x128xf32>
    %28 = tpu.matmul %26, %27, %cst_28 {dimension_numbers = #tpu.dot_dimension_numbers<[1], [0], [0], [1], [0, 0, 1, 1], [], []>} : vector<16x128xbf16>, vector<128x128xbf16>, vector<16x128xf32> -> vector<16x128xf32>
    %c0_29 = arith.constant 0 : index
    %c0_30 = arith.constant 0 : index
    %29 = vector.load %arg13[%c0_29, %c0_30] : memref<1x128xf32, #tpu.memory_space<vmem>>, vector<1x128xf32>
    %30 = vector.broadcast %29 : vector<1x128xf32> to vector<16x128xf32>
    %31 = arith.addf %28, %30 : vector<16x128xf32>
    %cst_31 = arith.constant 0.000000e+00 : f32
    %32 = vector.broadcast %cst_31 : f32 to vector<16x128xf32>
    %33 = arith.maximumf %31, %32 : vector<16x128xf32>
    %34 = arith.truncf %33 : vector<16x128xf32> to vector<16x128xbf16>
    %c0_32 = arith.constant 0 : index
    %c0_33 = arith.constant 0 : index
    %35 = vector.load %arg14[%c0_32, %c0_33] : memref<128x128xbf16, #tpu.memory_space<vmem>>, vector<128x128xbf16>
    %cst_34 = arith.constant dense<0.000000e+00> : vector<16x128xf32>
    %36 = tpu.matmul %34, %35, %cst_34 {dimension_numbers = #tpu.dot_dimension_numbers<[1], [0], [0], [1], [0, 0, 1, 1], [], []>} : vector<16x128xbf16>, vector<128x128xbf16>, vector<16x128xf32> -> vector<16x128xf32>
    %c0_35 = arith.constant 0 : index
    %c0_36 = arith.constant 0 : index
    %37 = vector.load %arg15[%c0_35, %c0_36] : memref<1x128xf32, #tpu.memory_space<vmem>>, vector<1x128xf32>
    %38 = vector.broadcast %37 : vector<1x128xf32> to vector<16x128xf32>
    %39 = arith.addf %36, %38 : vector<16x128xf32>
    %40 = arith.truncf %39 : vector<16x128xf32> to vector<16x128xbf16>
    %c0_37 = arith.constant 0 : index
    %c0_38 = arith.constant 0 : index
    %41 = vector.load %arg16[%c0_37, %c0_38] : memref<16x128xbf16, #tpu.memory_space<vmem>>, vector<16x128xbf16>
    tpu.vector_store %arg16[%c0_37, %c0_38], %40 {strides = array<i32>} : memref<16x128xbf16, #tpu.memory_space<vmem>>, vector<16x128xbf16>,
    return
  }
  func.func @transform_0(%arg0: i32) -> (i32, i32) {
    %c0_i32 = arith.constant 0 : i32
    %c0_i32_0 = arith.constant 0 : i32
    return %arg0, %c0_i32 : i32, i32
  }
  func.func @transform_1(%arg0: i32) -> (i32, i32) {
    %c0_i32 = arith.constant 0 : i32
    %c0_i32_0 = arith.constant 0 : i32
    return %arg0, %c0_i32 : i32, i32
  }
  func.func @transform_2(%arg0: i32) -> (i32, i32) {
    %c0_i32 = arith.constant 0 : i32
    %c0_i32_0 = arith.constant 0 : i32
    return %arg0, %c0_i32 : i32, i32
  }
  func.func @transform_3(%arg0: i32) -> (i32, i32) {
    %c0_i32 = arith.constant 0 : i32
    %c0_i32_0 = arith.constant 0 : i32
    return %arg0, %c0_i32 : i32, i32
  }
  func.func @transform_4(%arg0: i32) -> (i32, i32) {
    %c0_i32 = arith.constant 0 : i32
    %c0_i32_0 = arith.constant 0 : i32
    %c0_i32_1 = arith.constant 0 : i32
    return %c0_i32, %c0_i32_0 : i32, i32
  }
  func.func @transform_5(%arg0: i32) -> (i32, i32) {
    %c0_i32 = arith.constant 0 : i32
    %c0_i32_0 = arith.constant 0 : i32
    %c0_i32_1 = arith.constant 0 : i32
    return %c0_i32, %c0_i32_0 : i32, i32
  }
  func.func @transform_6(%arg0: i32) -> (i32, i32) {
    %c0_i32 = arith.constant 0 : i32
    %c0_i32_0 = arith.constant 0 : i32
    %c0_i32_1 = arith.constant 0 : i32
    return %c0_i32, %c0_i32_0 : i32, i32
  }
  func.func @transform_7(%arg0: i32) -> (i32, i32) {
    %c0_i32 = arith.constant 0 : i32
    %c0_i32_0 = arith.constant 0 : i32
    %c0_i32_1 = arith.constant 0 : i32
    return %c0_i32, %c0_i32_0 : i32, i32
  }
  func.func @transform_8(%arg0: i32) -> (i32, i32) {
    %c0_i32 = arith.constant 0 : i32
    %c0_i32_0 = arith.constant 0 : i32
    %c0_i32_1 = arith.constant 0 : i32
    return %c0_i32, %c0_i32_0 : i32, i32
  }
  func.func @transform_9(%arg0: i32) -> (i32, i32) {
    %c0_i32 = arith.constant 0 : i32
    %c0_i32_0 = arith.constant 0 : i32
    %c0_i32_1 = arith.constant 0 : i32
    return %c0_i32, %c0_i32_0 : i32, i32
  }
  func.func @transform_10(%arg0: i32) -> (i32, i32) {
    %c0_i32 = arith.constant 0 : i32
    %c0_i32_0 = arith.constant 0 : i32
    %c0_i32_1 = arith.constant 0 : i32
    return %c0_i32, %c0_i32_0 : i32, i32
  }
  func.func @transform_11(%arg0: i32) -> (i32, i32) {
    %c0_i32 = arith.constant 0 : i32
    %c0_i32_0 = arith.constant 0 : i32
    %c0_i32_1 = arith.constant 0 : i32
    return %c0_i32, %c0_i32_0 : i32, i32
  }
  func.func @transform_12(%arg0: i32) -> (i32, i32) {
    %c0_i32 = arith.constant 0 : i32
    %c0_i32_0 = arith.constant 0 : i32
    %c0_i32_1 = arith.constant 0 : i32
    return %c0_i32, %c0_i32_0 : i32, i32
  }
  func.func @transform_13(%arg0: i32) -> (i32, i32) {
    %c0_i32 = arith.constant 0 : i32
    %c0_i32_0 = arith.constant 0 : i32
    %c0_i32_1 = arith.constant 0 : i32
    return %c0_i32, %c0_i32_0 : i32, i32
  }
  func.func @transform_14(%arg0: i32) -> (i32, i32) {
    %c0_i32 = arith.constant 0 : i32
    %c0_i32_0 = arith.constant 0 : i32
    %c0_i32_1 = arith.constant 0 : i32
    return %c0_i32, %c0_i32_0 : i32, i32
  }
  func.func @transform_15(%arg0: i32) -> (i32, i32) {
    %c0_i32 = arith.constant 0 : i32
    %c0_i32_0 = arith.constant 0 : i32
    return %arg0, %c0_i32 : i32, i32
  }
}

module attributes {stable_mosaic.version = 11 : i64} {
  func.func @kernel(%arg0: i32, %arg1: memref<16x8xbf16, #tpu.memory_space<vmem>>, %arg2: memref<16x16xbf16, #tpu.memory_space<vmem>>, %arg3: memref<16x12xbf16, #tpu.memory_space<vmem>>, %arg4: memref<16x4xbf16, #tpu.memory_space<vmem>>, %arg5: memref<8x128xbf16, #tpu.memory_space<vmem>>, %arg6: memref<16x128xbf16, #tpu.memory_space<vmem>>, %arg7: memref<12x128xbf16, #tpu.memory_space<vmem>>, %arg8: memref<4x128xbf16, #tpu.memory_space<vmem>>, %arg9: memref<1x128xf32, #tpu.memory_space<vmem>>, %arg10: memref<128x128xbf16, #tpu.memory_space<vmem>>, %arg11: memref<1x128xf32, #tpu.memory_space<vmem>>, %arg12: memref<128x128xbf16, #tpu.memory_space<vmem>>, %arg13: memref<1x128xf32, #tpu.memory_space<vmem>>, %arg14: memref<128x128xbf16, #tpu.memory_space<vmem>>, %arg15: memref<1x128xf32, #tpu.memory_space<vmem>>, %arg16: memref<16x128xbf16, #tpu.memory_space<vmem>>) attributes {dimension_semantics = [#tpu.dimension_semantics<parallel>], iteration_bounds = array<i64: 1>, scalar_prefetch = 0 : i64, scratch_operands = 0 : i64, tpu.core_type = #tpu.core_type<tc>, window_params = [{transform_indices = @transform_0, window_bounds = array<i64: 16, 8>}, {transform_indices = @transform_1, window_bounds = array<i64: 16, 16>}, {transform_indices = @transform_2, window_bounds = array<i64: 16, 12>}, {transform_indices = @transform_3, window_bounds = array<i64: 16, 4>}, {pipeline_mode = #tpu.pipeline_mode<synchronous>, transform_indices = @transform_4, window_bounds = array<i64: 8, 128>}, {pipeline_mode = #tpu.pipeline_mode<synchronous>, transform_indices = @transform_5, window_bounds = array<i64: 16, 128>}, {pipeline_mode = #tpu.pipeline_mode<synchronous>, transform_indices = @transform_6, window_bounds = array<i64: 12, 128>}, {pipeline_mode = #tpu.pipeline_mode<synchronous>, transform_indices = @transform_7, window_bounds = array<i64: 4, 128>}, {pipeline_mode = #tpu.pipeline_mode<synchronous>, transform_indices = @transform_8, window_bounds = array<i64: 1, 128>}, {pipeline_mode = #tpu.pipeline_mode<synchronous>, transform_indices = @transform_9, window_bounds = array<i64: 128, 128>}, {pipeline_mode = #tpu.pipeline_mode<synchronous>, transform_indices = @transform_10, window_bounds = array<i64: 1, 128>}, {pipeline_mode = #tpu.pipeline_mode<synchronous>, transform_indices = @transform_11, window_bounds = array<i64: 128, 128>}, {pipeline_mode = #tpu.pipeline_mode<synchronous>, transform_indices = @transform_12, window_bounds = array<i64: 1, 128>}, {pipeline_mode = #tpu.pipeline_mode<synchronous>, transform_indices = @transform_13, window_bounds = array<i64: 128, 128>}, {pipeline_mode = #tpu.pipeline_mode<synchronous>, transform_indices = @transform_14, window_bounds = array<i64: 1, 128>}, {transform_indices = @transform_15, window_bounds = array<i64: 16, 128>}]} {
    %c0 = arith.constant 0 : index
    %c0_0 = arith.constant 0 : index
    %0 = vector.load %arg1[%c0, %c0_0] : memref<16x8xbf16, #tpu.memory_space<vmem>>, vector<16x8xbf16>
    %c0_1 = arith.constant 0 : index
    %c0_2 = arith.constant 0 : index
    %1 = vector.load %arg5[%c0_1, %c0_2] : memref<8x128xbf16, #tpu.memory_space<vmem>>, vector<8x128xbf16>
    %cst = arith.constant dense<0.000000e+00> : vector<16x128xf32>
    %2 = tpu.matmul %0, %1, %cst {dimension_numbers = #tpu.dot_dimension_numbers<[1], [0], [0], [1], [0, 0, 1, 1], [], []>} : vector<16x8xbf16>, vector<8x128xbf16>, vector<16x128xf32> -> vector<16x128xf32>
    %c0_3 = arith.constant 0 : index
    %c0_4 = arith.constant 0 : index
    %3 = vector.load %arg2[%c0_3, %c0_4] : memref<16x16xbf16, #tpu.memory_space<vmem>>, vector<16x16xbf16>
    %c0_5 = arith.constant 0 : index
    %c0_6 = arith.constant 0 : index
    %4 = vector.load %arg6[%c0_5, %c0_6] : memref<16x128xbf16, #tpu.memory_space<vmem>>, vector<16x128xbf16>
    %cst_7 = arith.constant dense<0.000000e+00> : vector<16x128xf32>
    %5 = tpu.matmul %3, %4, %cst_7 {dimension_numbers = #tpu.dot_dimension_numbers<[1], [0], [0], [1], [0, 0, 1, 1], [], []>} : vector<16x16xbf16>, vector<16x128xbf16>, vector<16x128xf32> -> vector<16x128xf32>
    %6 = arith.addf %2, %5 : vector<16x128xf32>
    %c0_8 = arith.constant 0 : index
    %c0_9 = arith.constant 0 : index
    %7 = vector.load %arg3[%c0_8, %c0_9] : memref<16x12xbf16, #tpu.memory_space<vmem>>, vector<16x12xbf16>
    %c0_10 = arith.constant 0 : index
    %c0_11 = arith.constant 0 : index
    %8 = vector.load %arg7[%c0_10, %c0_11] : memref<12x128xbf16, #tpu.memory_space<vmem>>, vector<12x128xbf16>
    %cst_12 = arith.constant dense<0.000000e+00> : vector<16x128xf32>
    %9 = tpu.matmul %7, %8, %cst_12 {dimension_numbers = #tpu.dot_dimension_numbers<[1], [0], [0], [1], [0, 0, 1, 1], [], []>} : vector<16x12xbf16>, vector<12x128xbf16>, vector<16x128xf32> -> vector<16x128xf32>
    %10 = arith.addf %6, %9 : vector<16x128xf32>
    %c0_13 = arith.constant 0 : index
    %c0_14 = arith.constant 0 : index
    %11 = vector.load %arg4[%c0_13, %c0_14] : memref<16x4xbf16, #tpu.memory_space<vmem>>, vector<16x4xbf16>
    %c0_15 = arith.constant 0 : index
    %c0_16 = arith.constant 0 : index
    %12 = vector.load %arg8[%c0_15, %c0_16] : memref<4x128xbf16, #tpu.memory_space<vmem>>, vector<4x128xbf16>
    %cst_17 = arith.constant dense<0.000000e+00> : vector<16x128xf32>
    %13 = tpu.matmul %11, %12, %cst_17 {dimension_numbers = #tpu.dot_dimension_numbers<[1], [0], [0], [1], [0, 0, 1, 1], [], []>} : vector<16x4xbf16>, vector<4x128xbf16>, vector<16x128xf32> -> vector<16x128xf32>
    %14 = arith.addf %10, %13 : vector<16x128xf32>
    %c0_18 = arith.constant 0 : index
    %c0_19 = arith.constant 0 : index
    %15 = vector.load %arg9[%c0_18, %c0_19] : memref<1x128xf32, #tpu.memory_space<vmem>>, vector<1x128xf32>
    %16 = vector.broadcast %15 : vector<1x128xf32> to vector<16x128xf32>
    %17 = arith.addf %14, %16 : vector<16x128xf32>
    %18 = arith.truncf %17 : vector<16x128xf32> to vector<16x128xbf16>
    %c0_20 = arith.constant 0 : index
    %c0_21 = arith.constant 0 : index
    %19 = vector.load %arg10[%c0_20, %c0_21] : memref<128x128xbf16, #tpu.memory_space<vmem>>, vector<128x128xbf16>
    %cst_22 = arith.constant dense<0.000000e+00> : vector<16x128xf32>
    %20 = tpu.matmul %18, %19, %cst_22 {dimension_numbers = #tpu.dot_dimension_numbers<[1], [0], [0], [1], [0, 0, 1, 1], [], []>} : vector<16x128xbf16>, vector<128x128xbf16>, vector<16x128xf32> -> vector<16x128xf32>
    %c0_23 = arith.constant 0 : index
    %c0_24 = arith.constant 0 : index
    %21 = vector.load %arg11[%c0_23, %c0_24] : memref<1x128xf32, #tpu.memory_space<vmem>>, vector<1x128xf32>
    %22 = vector.broadcast %21 : vector<1x128xf32> to vector<16x128xf32>
    %23 = arith.addf %20, %22 : vector<16x128xf32>
    %cst_25 = arith.constant 0.000000e+00 : f32
    %24 = vector.broadcast %cst_25 : f32 to vector<16x128xf32>
    %25 = arith.maximumf %23, %24 : vector<16x128xf32>
    %26 = arith.truncf %25 : vector<16x128xf32> to vector<16x128xbf16>
    %c0_26 = arith.constant 0 : index
    %c0_27 = arith.constant 0 : index
    %27 = vector.load %arg12[%c0_26, %c0_27] : memref<128x128xbf16, #tpu.memory_space<vmem>>, vector<128x128xbf16>
    %cst_28 = arith.constant dense<0.000000e+00> : vector<16x128xf32>
    %28 = tpu.matmul %26, %27, %cst_28 {dimension_numbers = #tpu.dot_dimension_numbers<[1], [0], [0], [1], [0, 0, 1, 1], [], []>} : vector<16x128xbf16>, vector<128x128xbf16>, vector<16x128xf32> -> vector<16x128xf32>
    %c0_29 = arith.constant 0 : index
    %c0_30 = arith.constant 0 : index
    %29 = vector.load %arg13[%c0_29, %c0_30] : memref<1x128xf32, #tpu.memory_space<vmem>>, vector<1x128xf32>
    %30 = vector.broadcast %29 : vector<1x128xf32> to vector<16x128xf32>
    %31 = arith.addf %28, %30 : vector<16x128xf32>
    %cst_31 = arith.constant 0.000000e+00 : f32
    %32 = vector.broadcast %cst_31 : f32 to vector<16x128xf32>
    %33 = arith.maximumf %31, %32 : vector<16x128xf32>
    %34 = arith.truncf %33 : vector<16x128xf32> to vector<16x128xbf16>
    %c0_32 = arith.constant 0 : index
    %c0_33 = arith.constant 0 : index
    %35 = vector.load %arg14[%c0_32, %c0_33] : memref<128x128xbf16, #tpu.memory_space<vmem>>, vector<128x128xbf16>
    %cst_34 = arith.constant dense<0.000000e+00> : vector<16x128xf32>
    %36 = tpu.matmul %34, %35, %cst_34 {dimension_numbers = #tpu.dot_dimension_numbers<[1], [0], [0], [1], [0, 0, 1, 1], [], []>} : vector<16x128xbf16>, vector<128x128xbf16>, vector<16x128xf32> -> vector<16x128xf32>
    %c0_35 = arith.constant 0 : index
    %c0_36 = arith.constant 0 : index
    %37 = vector.load %arg15[%c0_35, %c0_36] : memref<1x128xf32, #tpu.memory_space<vmem>>, vector<1x128xf32>
    %38 = vector.broadcast %37 : vector<1x128xf32> to vector<16x128xf32>
    %39 = arith.addf %36, %38 : vector<16x128xf32>
    %40 = arith.truncf %39 : vector<16x128xf32> to vector<16x128xbf16>
    %c0_37 = arith.constant 0 : index
    %c0_38 = arith.constant 0 : index
    %41 = vector.load %arg16[%c0_37, %c0_38] : memref<16x128xbf16, #tpu.memory_space<vmem>>, vector<16x128xbf16>
    tpu.vector_store %arg16[%c0_37, %c0_38], %40 {strides = array<i32>} : memref<16x128xbf16, #tpu.memory_space<vmem>>, vector<16x128xbf16>,
    return
  }
  func.func @transform_0(%arg0: i32) -> (i32, i32) {
    %c0_i32 = arith.constant 0 : i32
    %c0_i32_0 = arith.constant 0 : i32
    return %arg0, %c0_i32 : i32, i32
  }
  func.func @transform_1(%arg0: i32) -> (i32, i32) {
    %c0_i32 = arith.constant 0 : i32
    %c0_i32_0 = arith.constant 0 : i32
    return %arg0, %c0_i32 : i32, i32
  }
  func.func @transform_2(%arg0: i32) -> (i32, i32) {
    %c0_i32 = arith.constant 0 : i32
    %c0_i32_0 = arith.constant 0 : i32
    return %arg0, %c0_i32 : i32, i32
  }
  func.func @transform_3(%arg0: i32) -> (i32, i32) {
    %c0_i32 = arith.constant 0 : i32
    %c0_i32_0 = arith.constant 0 : i32
    return %arg0, %c0_i32 : i32, i32
  }
  func.func @transform_4(%arg0: i32) -> (i32, i32) {
    %c0_i32 = arith.constant 0 : i32
    %c0_i32_0 = arith.constant 0 : i32
    %c0_i32_1 = arith.constant 0 : i32
    return %c0_i32, %c0_i32_0 : i32, i32
  }
  func.func @transform_5(%arg0: i32) -> (i32, i32) {
    %c0_i32 = arith.constant 0 : i32
    %c0_i32_0 = arith.constant 0 : i32
    %c0_i32_1 = arith.constant 0 : i32
    return %c0_i32, %c0_i32_0 : i32, i32
  }
  func.func @transform_6(%arg0: i32) -> (i32, i32) {
    %c0_i32 = arith.constant 0 : i32
    %c0_i32_0 = arith.constant 0 : i32
    %c0_i32_1 = arith.constant 0 : i32
    return %c0_i32, %c0_i32_0 : i32, i32
  }
  func.func @transform_7(%arg0: i32) -> (i32, i32) {
    %c0_i32 = arith.constant 0 : i32
    %c0_i32_0 = arith.constant 0 : i32
    %c0_i32_1 = arith.constant 0 : i32
    return %c0_i32, %c0_i32_0 : i32, i32
  }
  func.func @transform_8(%arg0: i32) -> (i32, i32) {
    %c0_i32 = arith.constant 0 : i32
    %c0_i32_0 = arith.constant 0 : i32
    %c0_i32_1 = arith.constant 0 : i32
    return %c0_i32, %c0_i32_0 : i32, i32
  }
  func.func @transform_9(%arg0: i32) -> (i32, i32) {
    %c0_i32 = arith.constant 0 : i32
    %c0_i32_0 = arith.constant 0 : i32
    %c0_i32_1 = arith.constant 0 : i32
    return %c0_i32, %c0_i32_0 : i32, i32
  }
  func.func @transform_10(%arg0: i32) -> (i32, i32) {
    %c0_i32 = arith.constant 0 : i32
    %c0_i32_0 = arith.constant 0 : i32
    %c0_i32_1 = arith.constant 0 : i32
    return %c0_i32, %c0_i32_0 : i32, i32
  }
  func.func @transform_11(%arg0: i32) -> (i32, i32) {
    %c0_i32 = arith.constant 0 : i32
    %c0_i32_0 = arith.constant 0 : i32
    %c0_i32_1 = arith.constant 0 : i32
    return %c0_i32, %c0_i32_0 : i32, i32
  }
  func.func @transform_12(%arg0: i32) -> (i32, i32) {
    %c0_i32 = arith.constant 0 : i32
    %c0_i32_0 = arith.constant 0 : i32
    %c0_i32_1 = arith.constant 0 : i32
    return %c0_i32, %c0_i32_0 : i32, i32
  }
  func.func @transform_13(%arg0: i32) -> (i32, i32) {
    %c0_i32 = arith.constant 0 : i32
    %c0_i32_0 = arith.constant 0 : i32
    %c0_i32_1 = arith.constant 0 : i32
    return %c0_i32, %c0_i32_0 : i32, i32
  }
  func.func @transform_14(%arg0: i32) -> (i32, i32) {
    %c0_i32 = arith.constant 0 : i32
    %c0_i32_0 = arith.constant 0 : i32
    %c0_i32_1 = arith.constant 0 : i32
    return %c0_i32, %c0_i32_0 : i32, i32
  }
  func.func @transform_15(%arg0: i32) -> (i32, i32) {
    %c0_i32 = arith.constant 0 : i32
    %c0_i32_0 = arith.constant 0 : i32
    return %arg0, %c0_i32 : i32, i32
  }
}

</mosaic_0001>

<llo_original>
// kernel: tpu_custom_call.1
$region0: #{tpu_custom_call.1}
  #allocation0 [shape = 'u32[]', space=smem, size = 0x4, offset = 0x4, fixed_abs, tag = 'smem constant byte address 0x4 - core index']
  #allocation1 [shape = 'u32[72,128]{1,0:T(1,128)}', space=vmem, size = 0x9000, scoped, tag = 'internal scratch']
  %s0 = inlined_call_operand.vmem [shape: bf16[16,8], index: 0, kind: input, shape index: {}]
  %s1 = inlined_call_operand.vmem [shape: bf16[16,16], index: 1, kind: input, shape index: {}]
  %s2 = inlined_call_operand.vmem [shape: bf16[16,12], index: 2, kind: input, shape index: {}]
  %s3 = inlined_call_operand.vmem [shape: bf16[16,4], index: 3, kind: input, shape index: {}]
  %s4 = inlined_call_operand.hbm [shape: bf16[8,128], index: 4, kind: input, shape index: {}]
  %s5 = inlined_call_operand.vmem [shape: bf16[16,128], index: 5, kind: input, shape index: {}]
  %s6 = inlined_call_operand.hbm [shape: bf16[12,128], index: 6, kind: input, shape index: {}]
  %s7 = inlined_call_operand.vmem [shape: bf16[4,128], index: 7, kind: input, shape index: {}]
  %s8 = inlined_call_operand.vmem [shape: f32[1,128], index: 8, kind: input, shape index: {}]
  %s9 = inlined_call_operand.hbm [shape: bf16[128,128], index: 9, kind: input, shape index: {}]
  %s10 = inlined_call_operand.vmem [shape: f32[1,128], index: 10, kind: input, shape index: {}]
  %s11 = inlined_call_operand.hbm [shape: bf16[128,128], index: 11, kind: input, shape index: {}]
  %s12 = inlined_call_operand.vmem [shape: f32[1,128], index: 12, kind: input, shape index: {}]
  %s13 = inlined_call_operand.hbm [shape: bf16[128,128], index: 13, kind: input, shape index: {}]
  %s14 = inlined_call_operand.vmem [shape: f32[1,128], index: 14, kind: input, shape index: {}]
  %s15 = inlined_call_operand.hbm [shape: bf16[16,128], index: 15, kind: output, shape index: {}]
  %s16 = sld [smem:[#allocation0]]
  $region90: #{tpu_custom_call.1} parent=0
    _
  %s18 = ssub.s32 1, %s16
  %s19 = scalar_select 0, %s18, %s16
  $region1: #{tpu_custom_call.1} parent=0
    #allocation2 [shape = 'u8[2048]{0}', space=vmem, size = 0x800, scoped, tag = 'input window, operand 4, single buffered']
    #allocation3 [shape = 's32[1]{0}', space=sflag, size = 0x4, scoped, tag = 'scoped memory for tpu_custom_call.1']
    #allocation4 [shape = 's32[1]{0}', space=sflag, size = 0x4, scoped, tag = 'scoped memory for tpu_custom_call.1']
    #allocation5 [shape = 'u8[4096]{0}', space=vmem, size = 0x1000, scoped, tag = 'input window, operand 6, single buffered']
    #allocation6 [shape = 's32[1]{0}', space=sflag, size = 0x4, scoped, tag = 'scoped memory for tpu_custom_call.1']
    #allocation7 [shape = 'u8[32768]{0}', space=vmem, size = 0x8000, scoped, tag = 'input window, operand 9, single buffered']
    #allocation8 [shape = 'u8[32768]{0}', space=vmem, size = 0x8000, scoped, tag = 'input window, operand 11, single buffered']
    #allocation9 [shape = 's32[1]{0}', space=sflag, size = 0x4, scoped, tag = 'scoped memory for tpu_custom_call.1']
    #allocation10 [shape = 'u8[32768]{0}', space=vmem, size = 0x8000, scoped, tag = 'input window, operand 13, single buffered']
    #allocation11 [shape = 'u8[4096]{0}', space=vmem, size = 0x1000, scoped, tag = 'output window, operand 0, single buffered']
    %20 = vsyncpa [#allocation3], 0
    %21 = vsyncpa [#allocation6], 0
    %22 = vsyncpa [#allocation9], 0
    %23 = vsyncpa [#allocation4], 0
    // Predicated region
    $region2: #{tpu_custom_call.1} parent=1 // pred_check
      _
    $region3: #{tpu_custom_call.1} parent=1 // pred_check_branch
      %25 = sbr.rel (0) target = $region5
    $region4: #{tpu_custom_call.1} parent=1 // pred_region
      _
    $region5: #{tpu_custom_call.1} parent=1 // pred_fallthru
      _
    // Predicated region
    $region6: #{tpu_custom_call.1} parent=1 // pred_check
      _
    $region7: #{tpu_custom_call.1} parent=1 // pred_check_branch
      %27 = sbr.rel (0) target = $region9
    $region8: #{tpu_custom_call.1} parent=1 // pred_region
      _
    $region9: #{tpu_custom_call.1} parent=1 // pred_fallthru
      _
    // Predicated region
    $region10: #{tpu_custom_call.1} parent=1 // pred_check
      _
    $region11: #{tpu_custom_call.1} parent=1 // pred_check_branch
      %29 = sbr.rel (0) target = $region13
    $region12: #{tpu_custom_call.1} parent=1 // pred_region
      _
    $region13: #{tpu_custom_call.1} parent=1 // pred_fallthru
      _
    // Predicated region
    $region14: #{tpu_custom_call.1} parent=1 // pred_check
      _
    $region15: #{tpu_custom_call.1} parent=1 // pred_check_branch
      %31 = sbr.rel (0) target = $region17
    $region16: #{tpu_custom_call.1} parent=1 // pred_region
      _
    $region17: #{tpu_custom_call.1} parent=1 // pred_fallthru
      _
    // Predicated region
    $region18: #{tpu_custom_call.1} parent=1 // pred_check
      _
    $region19: #{tpu_custom_call.1} parent=1 // pred_check_branch
      %33 = sbr.rel (0) target = $region21
    $region20: #{tpu_custom_call.1} parent=1 // pred_region
      %35 = vsyncadd [#allocation3], 0
      %s37 = sshll.u32 %s4, 4
      %s38 = int_to_ptr.hbm [resolvable:$true] %s37
      %s39 = sshll.u32 [#allocation2], 4
      %s40 = int_to_ptr.vmem [resolvable:$true] %s39
      %42 = dma.hbm_to_vmem [thread:$0]  %s38, 64, %s40, [#allocation3]
    $region21: #{tpu_custom_call.1} parent=1 // pred_fallthru
      _
    // Predicated region
    $region22: #{tpu_custom_call.1} parent=1 // pred_check
      _
    $region23: #{tpu_custom_call.1} parent=1 // pred_check_branch
      %44 = sbr.rel (0) target = $region25
    $region24: #{tpu_custom_call.1} parent=1 // pred_region
      _
    $region25: #{tpu_custom_call.1} parent=1 // pred_fallthru
      _
    // Predicated region
    $region26: #{tpu_custom_call.1} parent=1 // pred_check
      _
    $region27: #{tpu_custom_call.1} parent=1 // pred_check_branch
      %46 = sbr.rel (0) target = $region29
    $region28: #{tpu_custom_call.1} parent=1 // pred_region
      %48 = vsyncadd [#allocation6], 0
      %s49 = sshll.u32 %s6, 4
      %s50 = int_to_ptr.hbm [resolvable:$true] %s49
      %s51 = sshll.u32 [#allocation5], 4
      %s52 = int_to_ptr.vmem [resolvable:$true] %s51
      %57 = dma.hbm_to_vmem [thread:$0]  %s50, 128, %s52, [#allocation6], 64, 64, 4
    $region29: #{tpu_custom_call.1} parent=1 // pred_fallthru
      _
    // Predicated region
    $region30: #{tpu_custom_call.1} parent=1 // pred_check
      _
    $region31: #{tpu_custom_call.1} parent=1 // pred_check_branch
      %59 = sbr.rel (0) target = $region33
    $region32: #{tpu_custom_call.1} parent=1 // pred_region
      _
    $region33: #{tpu_custom_call.1} parent=1 // pred_fallthru
      _
    // Predicated region
    $region34: #{tpu_custom_call.1} parent=1 // pred_check
      _
    $region35: #{tpu_custom_call.1} parent=1 // pred_check_branch
      %61 = sbr.rel (0) target = $region37
    $region36: #{tpu_custom_call.1} parent=1 // pred_region
      _
    $region37: #{tpu_custom_call.1} parent=1 // pred_fallthru
      _
    // Predicated region
    $region38: #{tpu_custom_call.1} parent=1 // pred_check
      _
    $region39: #{tpu_custom_call.1} parent=1 // pred_check_branch
      %63 = sbr.rel (0) target = $region41
    $region40: #{tpu_custom_call.1} parent=1 // pred_region
      %65 = vsyncadd [#allocation6], 0
      %s66 = sshll.u32 %s9, 4
      %s67 = int_to_ptr.hbm [resolvable:$true] %s66
      %s68 = sshll.u32 [#allocation7], 4
      %s69 = int_to_ptr.vmem [resolvable:$true] %s68
      %74 = dma.hbm_to_vmem [thread:$0]  %s67, 1024, %s69, [#allocation6], 64, 64, 4
    $region41: #{tpu_custom_call.1} parent=1 // pred_fallthru
      _
    // Predicated region
    $region42: #{tpu_custom_call.1} parent=1 // pred_check
      _
    $region43: #{tpu_custom_call.1} parent=1 // pred_check_branch
      %76 = sbr.rel (0) target = $region45
    $region44: #{tpu_custom_call.1} parent=1 // pred_region
      _
    $region45: #{tpu_custom_call.1} parent=1 // pred_fallthru
      _
    // Predicated region
    $region46: #{tpu_custom_call.1} parent=1 // pred_check
      _
    $region47: #{tpu_custom_call.1} parent=1 // pred_check_branch
      %78 = sbr.rel (0) target = $region49
    $region48: #{tpu_custom_call.1} parent=1 // pred_region
      %80 = vsyncadd [#allocation9], 0
      %s81 = sshll.u32 %s11, 4
      %s82 = int_to_ptr.hbm [resolvable:$true] %s81
      %s83 = sshll.u32 [#allocation8], 4
      %s84 = int_to_ptr.vmem [resolvable:$true] %s83
      %89 = dma.hbm_to_vmem [thread:$0]  %s82, 1024, %s84, [#allocation9], 64, 64, 4
    $region49: #{tpu_custom_call.1} parent=1 // pred_fallthru
      _
    // Predicated region
    $region50: #{tpu_custom_call.1} parent=1 // pred_check
      _
    $region51: #{tpu_custom_call.1} parent=1 // pred_check_branch
      %91 = sbr.rel (0) target = $region53
    $region52: #{tpu_custom_call.1} parent=1 // pred_region
      _
    $region53: #{tpu_custom_call.1} parent=1 // pred_fallthru
      _
    // Predicated region
    $region54: #{tpu_custom_call.1} parent=1 // pred_check
      _
    $region55: #{tpu_custom_call.1} parent=1 // pred_check_branch
      %93 = sbr.rel (0) target = $region57
    $region56: #{tpu_custom_call.1} parent=1 // pred_region
      %95 = vsyncadd [#allocation9], 0
      %s96 = sshll.u32 %s13, 4
      %s97 = int_to_ptr.hbm [resolvable:$true] %s96
      %s98 = sshll.u32 [#allocation10], 4
      %s99 = int_to_ptr.vmem [resolvable:$true] %s98
      %104 = dma.hbm_to_vmem [thread:$0]  %s97, 1024, %s99, [#allocation9], 64, 64, 4
    $region57: #{tpu_custom_call.1} parent=1 // pred_fallthru
      _
    // Predicated region
    $region58: #{tpu_custom_call.1} parent=1 // pred_check
      _
    $region59: #{tpu_custom_call.1} parent=1 // pred_check_branch
      %106 = sbr.rel (0) target = $region61
    $region60: #{tpu_custom_call.1} parent=1 // pred_region
      _
    $region61: #{tpu_custom_call.1} parent=1 // pred_fallthru
      _
    // Predicated region
    $region62: #{tpu_custom_call.1} parent=1 // pred_check
      _
    $region63: #{tpu_custom_call.1} parent=1 // pred_check_branch
      %108 = sbr.rel (0) target = $region65
    $region64: #{tpu_custom_call.1} parent=1 // pred_region
      %110 = dma.done [#allocation3], 64
    $region65: #{tpu_custom_call.1} parent=1 // pred_fallthru
      _
    // Predicated region
    $region66: #{tpu_custom_call.1} parent=1 // pred_check
      _
    $region67: #{tpu_custom_call.1} parent=1 // pred_check_branch
      %112 = sbr.rel (0) target = $region69
    $region68: #{tpu_custom_call.1} parent=1 // pred_region
      %114 = dma.done [#allocation6], 128
    $region69: #{tpu_custom_call.1} parent=1 // pred_fallthru
      _
    // Predicated region
    $region70: #{tpu_custom_call.1} parent=1 // pred_check
      _
    $region71: #{tpu_custom_call.1} parent=1 // pred_check_branch
      %116 = sbr.rel (0) target = $region73
    $region72: #{tpu_custom_call.1} parent=1 // pred_region
      %118 = dma.done [#allocation6], 1024
    $region73: #{tpu_custom_call.1} parent=1 // pred_fallthru
      _
    // Predicated region
    $region74: #{tpu_custom_call.1} parent=1 // pred_check
      _
    $region75: #{tpu_custom_call.1} parent=1 // pred_check_branch
      %120 = sbr.rel (0) target = $region77
    $region76: #{tpu_custom_call.1} parent=1 // pred_region
      %122 = dma.done [#allocation9], 1024
    $region77: #{tpu_custom_call.1} parent=1 // pred_fallthru
      _
    // Predicated region
    $region78: #{tpu_custom_call.1} parent=1 // pred_check
      _
    $region79: #{tpu_custom_call.1} parent=1 // pred_check_branch
      %124 = sbr.rel (0) target = $region81
    $region80: #{tpu_custom_call.1} parent=1 // pred_region
      %126 = dma.done [#allocation9], 1024
    $region81: #{tpu_custom_call.1} parent=1 // pred_fallthru
      _
    %v128 = vld [vmem:[%s0] sm:$0xf]
    %v129 = vld [vmem:[%s0 + $0x4] sm:$0xf]
    %v130 = vld [vmem:[#allocation2] sm:$0xf]
    %v131 = vld [vmem:[%s1] sm:$0xf]
    %v132 = vld [vmem:[%s1 + $0x4] sm:$0xf]
    %v133 = vld [vmem:[%s5] sm:$0xf]
    %v134 = vld [vmem:[%s5 + $0x4] sm:$0xf]
    %v137 = vunpack.c.l.b16 %v131
    %v138 = vunpack.c.l.b16 %v132
    %v139 = vpack.c.b16 %v138, %v137
    %v142 = vunpack.c.l.b16 %v133
    %v143 = vunpack.c.l.b16 %v134
    %v144 = vpack.c.b16 %v143, %v142
    %vm146 = vcmask 130048
    %v148 = vsel %vm146, %v139, 0
    %150 = vmatpush.bf16.msra.mxu0 0
    %151 = vmatpush.bf16.msra.mxu0 0
    %152 = vmatpush.bf16.msra.mxu0 0
    %153 = vmatpush.bf16.msra.mxu0 0
    %154 = vmatpush.bf16.msra.mxu0 0
    %155 = vmatpush.bf16.msra.mxu0 0
    %156 = vmatpush.bf16.msra.mxu0 0
    %157 = vmatpush.bf16.msra.mxu0 %v144
    %158 = vmatmul.bf16.gmra.mxu0 %v148
    %v159 = vpop.f32.mrf.mxu0
    %v160 = vadd.f32 0.0, %v159
    %v161 = vpop.f32.mrf.mxu0
    %v162 = vadd.f32 0.0, %v161
    %163 = vdwg.mxu0
    %v166 = vunpack.c.l.b16 %v128
    %v167 = vunpack.c.l.b16 %v129
    %v168 = vpack.c.b16 %v167, %v166
    %vm169 = vcmask 64512
    %v171 = vsel %vm169, %v168, 0
    %vm173 = vcmask 1043456
    %v175 = vsel %vm173, %v130, 0
    %177 = vmatpush.bf16.msra.mxu0 0
    %178 = vmatpush.bf16.msra.mxu0 0
    %179 = vmatpush.bf16.msra.mxu0 0
    %180 = vmatpush.bf16.msra.mxu0 0
    %181 = vmatpush.bf16.msra.mxu0 0
    %182 = vmatpush.bf16.msra.mxu0 0
    %183 = vmatpush.bf16.msra.mxu0 0
    %184 = vmatpush.bf16.msra.mxu0 %v175
    %185 = vmatmul.bf16.gmra.mxu0 %v171
    %v186 = vpop.f32.mrf.mxu0
    %v187 = vadd.f32 %v160, %v186
    %v188 = vpop.f32.mrf.mxu0
    %v189 = vadd.f32 %v162, %v188
    %190 = vdwg.mxu0
    %v191 = vld [vmem:[%s2] sm:$0xf]
    %v192 = vld [vmem:[%s2 + $0x4] sm:$0xf]
    %v193 = vld [vmem:[#allocation5] sm:$0xf]
    %v194 = vld [vmem:[#allocation5 + $0x4] sm:$0x3]
    %v197 = vunpack.c.l.b16 %v191
    %v198 = vunpack.c.l.b16 %v192
    %v199 = vpack.c.b16 %v198, %v197
    %v202 = vunpack.c.l.b16 %v193
    %v203 = vunpack.c.l.b16 %v194
    %v204 = vpack.c.b16 %v203, %v202
    %vm205 = vcmask 97280
    %v207 = vsel %vm205, %v199, 0
    %vm209 = vcmask 1045504
    %v211 = vsel %vm209, %v204, 0
    %213 = vmatpush.bf16.msra.mxu0 0
    %214 = vmatpush.bf16.msra.mxu0 0
    %215 = vmatpush.bf16.msra.mxu0 0
    %216 = vmatpush.bf16.msra.mxu0 0
    %217 = vmatpush.bf16.msra.mxu0 0
    %218 = vmatpush.bf16.msra.mxu0 0
    %219 = vmatpush.bf16.msra.mxu0 0
    %220 = vmatpush.bf16.msra.mxu0 %v211
    %221 = vmatmul.bf16.gmra.mxu0 %v207
    %v222 = vpop.f32.mrf.mxu0
    %v223 = vadd.f32 0.0, %v222
    %v224 = vpop.f32.mrf.mxu0
    %v225 = vadd.f32 0.0, %v224
    %226 = vdwg.mxu0
    %v227 = vadd.f32 %v187, %v223
    %v228 = vadd.f32 %v189, %v225
    %v229 = vld [vmem:[%s3] sm:$0xf]
    %v230 = vld [vmem:[%s3 + $0x4] sm:$0xf]
    %v231 = vld [vmem:[%s7] sm:$0x3]
    %v234 = vunpack.c.l.b16 %v229
    %v235 = vunpack.c.l.b16 %v230
    %v236 = vpack.c.b16 %v235, %v234
    %vm237 = vcmask 31744
    %v239 = vsel %vm237, %v236, 0
    %vm241 = vcmask 1041408
    %v243 = vsel %vm241, %v231, 0
    %245 = vmatpush.bf16.msra.mxu0 0
    %246 = vmatpush.bf16.msra.mxu0 0
    %247 = vmatpush.bf16.msra.mxu0 0
    %248 = vmatpush.bf16.msra.mxu0 0
    %249 = vmatpush.bf16.msra.mxu0 0
    %250 = vmatpush.bf16.msra.mxu0 0
    %251 = vmatpush.bf16.msra.mxu0 0
    %252 = vmatpush.bf16.msra.mxu0 %v243
    %253 = vmatmul.bf16.gmra.mxu0 %v239
    %v254 = vpop.f32.mrf.mxu0
    %v255 = vadd.f32 0.0, %v254
    %v256 = vpop.f32.mrf.mxu0
    %v257 = vadd.f32 0.0, %v256
    %258 = vdwg.mxu0
    %v259 = vadd.f32 %v227, %v255
    %v260 = vadd.f32 %v228, %v257
    %v261 = vld [vmem:[%s8] sm:$0x1]
    %v263 = vperm.slane %v261, 0
    %v265 = vadd.f32 %v259, %v263
    %v266 = vadd.f32 %v260, %v263
    %v267 = vpack.c.bf16 %v266, %v265
    %v268 = vld [vmem:[#allocation7] sm:$0xf]
    %v269 = vld [vmem:[#allocation7 + $0x4] sm:$0xf]
    %v270 = vld [vmem:[#allocation7 + $0x8] sm:$0xf]
    %v271 = vld [vmem:[#allocation7 + $0xc] sm:$0xf]
    %v272 = vld [vmem:[#allocation7 + $0x10] sm:$0xf]
    %v273 = vld [vmem:[#allocation7 + $0x14] sm:$0xf]
    %v274 = vld [vmem:[#allocation7 + $0x18] sm:$0xf]
    %v275 = vld [vmem:[#allocation7 + $0x1c] sm:$0xf]
    %v276 = vld [vmem:[#allocation7 + $0x20] sm:$0xf]
    %v277 = vld [vmem:[#allocation7 + $0x24] sm:$0xf]
    %v278 = vld [vmem:[#allocation7 + $0x28] sm:$0xf]
    %v279 = vld [vmem:[#allocation7 + $0x2c] sm:$0xf]
    %v280 = vld [vmem:[#allocation7 + $0x30] sm:$0xf]
    %v281 = vld [vmem:[#allocation7 + $0x34] sm:$0xf]
    %v282 = vld [vmem:[#allocation7 + $0x38] sm:$0xf]
    %v283 = vld [vmem:[#allocation7 + $0x3c] sm:$0xf]
    %v284 = vld [vmem:[%s10] sm:$0x1]
    %v286 = vperm.slane %v284, 0
    %v304 = vunpack.c.l.b16 %v268
    %v305 = vunpack.c.l.b16 %v269
    %v306 = vunpack.c.l.b16 %v270
    %v307 = vunpack.c.l.b16 %v271
    %v308 = vunpack.c.l.b16 %v272
    %v309 = vunpack.c.l.b16 %v273
    %v310 = vunpack.c.l.b16 %v274
    %v311 = vunpack.c.l.b16 %v275
    %v312 = vunpack.c.l.b16 %v276
    %v313 = vunpack.c.l.b16 %v277
    %v314 = vunpack.c.l.b16 %v278
    %v315 = vunpack.c.l.b16 %v279
    %v316 = vunpack.c.l.b16 %v280
    %v317 = vunpack.c.l.b16 %v281
    %v318 = vunpack.c.l.b16 %v282
    %v319 = vunpack.c.l.b16 %v283
    %v320 = vpack.c.b16 %v305, %v304
    %v321 = vpack.c.b16 %v307, %v306
    %v322 = vpack.c.b16 %v309, %v308
    %v323 = vpack.c.b16 %v311, %v310
    %v324 = vpack.c.b16 %v313, %v312
    %v325 = vpack.c.b16 %v315, %v314
    %v326 = vpack.c.b16 %v317, %v316
    %v327 = vpack.c.b16 %v319, %v318
    %336 = vmatpush.bf16.msra.mxu0 %v327
    %337 = vmatpush.bf16.msra.mxu0 %v326
    %338 = vmatpush.bf16.msra.mxu0 %v325
    %339 = vmatpush.bf16.msra.mxu0 %v324
    %340 = vmatpush.bf16.msra.mxu0 %v323
    %341 = vmatpush.bf16.msra.mxu0 %v322
    %342 = vmatpush.bf16.msra.mxu0 %v321
    %343 = vmatpush.bf16.msra.mxu0 %v320
    %344 = vmatmul.bf16.gmra.mxu0 %v267
    %v345 = vpop.f32.mrf.mxu0
    %v346 = vadd.f32 %v286, %v345
    %v347 = vpop.f32.mrf.mxu0
    %v348 = vadd.f32 %v286, %v347
    %349 = vdwg.mxu0
    %v350 = vmax.f32 %v346, 0.0
    %v351 = vmax.f32 %v348, 0.0
    %v352 = vpack.c.bf16 %v351, %v350
    %v353 = vld [vmem:[#allocation8] sm:$0xf]
    %v354 = vld [vmem:[#allocation8 + $0x4] sm:$0xf]
    %v355 = vld [vmem:[#allocation8 + $0x8] sm:$0xf]
    %v356 = vld [vmem:[#allocation8 + $0xc] sm:$0xf]
    %v357 = vld [vmem:[#allocation8 + $0x10] sm:$0xf]
    %v358 = vld [vmem:[#allocation8 + $0x14] sm:$0xf]
    %v359 = vld [vmem:[#allocation8 + $0x18] sm:$0xf]
    %v360 = vld [vmem:[#allocation8 + $0x1c] sm:$0xf]
    %v361 = vld [vmem:[#allocation8 + $0x20] sm:$0xf]
    %v362 = vld [vmem:[#allocation8 + $0x24] sm:$0xf]
    %v363 = vld [vmem:[#allocation8 + $0x28] sm:$0xf]
    %v364 = vld [vmem:[#allocation8 + $0x2c] sm:$0xf]
    %v365 = vld [vmem:[#allocation8 + $0x30] sm:$0xf]
    %v366 = vld [vmem:[#allocation8 + $0x34] sm:$0xf]
    %v367 = vld [vmem:[#allocation8 + $0x38] sm:$0xf]
    %v368 = vld [vmem:[#allocation8 + $0x3c] sm:$0xf]
    %v369 = vld [vmem:[%s12] sm:$0x1]
    %v371 = vperm.slane %v369, 0
    %v389 = vunpack.c.l.b16 %v353
    %v390 = vunpack.c.l.b16 %v354
    %v391 = vunpack.c.l.b16 %v355
    %v392 = vunpack.c.l.b16 %v356
    %v393 = vunpack.c.l.b16 %v357
    %v394 = vunpack.c.l.b16 %v358
    %v395 = vunpack.c.l.b16 %v359
    %v396 = vunpack.c.l.b16 %v360
    %v397 = vunpack.c.l.b16 %v361
    %v398 = vunpack.c.l.b16 %v362
    %v399 = vunpack.c.l.b16 %v363
    %v400 = vunpack.c.l.b16 %v364
    %v401 = vunpack.c.l.b16 %v365
    %v402 = vunpack.c.l.b16 %v366
    %v403 = vunpack.c.l.b16 %v367
    %v404 = vunpack.c.l.b16 %v368
    %v405 = vpack.c.b16 %v390, %v389
    %v406 = vpack.c.b16 %v392, %v391
    %v407 = vpack.c.b16 %v394, %v393
    %v408 = vpack.c.b16 %v396, %v395
    %v409 = vpack.c.b16 %v398, %v397
    %v410 = vpack.c.b16 %v400, %v399
    %v411 = vpack.c.b16 %v402, %v401
    %v412 = vpack.c.b16 %v404, %v403
    %421 = vmatpush.bf16.msra.mxu0 %v412
    %422 = vmatpush.bf16.msra.mxu0 %v411
    %423 = vmatpush.bf16.msra.mxu0 %v410
    %424 = vmatpush.bf16.msra.mxu0 %v409
    %425 = vmatpush.bf16.msra.mxu0 %v408
    %426 = vmatpush.bf16.msra.mxu0 %v407
    %427 = vmatpush.bf16.msra.mxu0 %v406
    %428 = vmatpush.bf16.msra.mxu0 %v405
    %429 = vmatmul.bf16.gmra.mxu0 %v352
    %v430 = vpop.f32.mrf.mxu0
    %v431 = vadd.f32 %v371, %v430
    %v432 = vpop.f32.mrf.mxu0
    %v433 = vadd.f32 %v371, %v432
    %434 = vdwg.mxu0
    %v435 = vmax.f32 %v431, 0.0
    %v436 = vmax.f32 %v433, 0.0
    %v437 = vpack.c.bf16 %v436, %v435
    %v438 = vld [vmem:[#allocation10] sm:$0xf]
    %v439 = vld [vmem:[#allocation10 + $0x4] sm:$0xf]
    %v440 = vld [vmem:[#allocation10 + $0x8] sm:$0xf]
    %v441 = vld [vmem:[#allocation10 + $0xc] sm:$0xf]
    %v442 = vld [vmem:[#allocation10 + $0x10] sm:$0xf]
    %v443 = vld [vmem:[#allocation10 + $0x14] sm:$0xf]
    %v444 = vld [vmem:[#allocation10 + $0x18] sm:$0xf]
    %v445 = vld [vmem:[#allocation10 + $0x1c] sm:$0xf]
    %v446 = vld [vmem:[#allocation10 + $0x20] sm:$0xf]
    %v447 = vld [vmem:[#allocation10 + $0x24] sm:$0xf]
    %v448 = vld [vmem:[#allocation10 + $0x28] sm:$0xf]
    %v449 = vld [vmem:[#allocation10 + $0x2c] sm:$0xf]
    %v450 = vld [vmem:[#allocation10 + $0x30] sm:$0xf]
    %v451 = vld [vmem:[#allocation10 + $0x34] sm:$0xf]
    %v452 = vld [vmem:[#allocation10 + $0x38] sm:$0xf]
    %v453 = vld [vmem:[#allocation10 + $0x3c] sm:$0xf]
    %v454 = vld [vmem:[%s14] sm:$0x1]
    %v456 = vperm.slane %v454, 0
    %v474 = vunpack.c.l.b16 %v438
    %v475 = vunpack.c.l.b16 %v439
    %v476 = vunpack.c.l.b16 %v440
    %v477 = vunpack.c.l.b16 %v441
    %v478 = vunpack.c.l.b16 %v442
    %v479 = vunpack.c.l.b16 %v443
    %v480 = vunpack.c.l.b16 %v444
    %v481 = vunpack.c.l.b16 %v445
    %v482 = vunpack.c.l.b16 %v446
    %v483 = vunpack.c.l.b16 %v447
    %v484 = vunpack.c.l.b16 %v448
    %v485 = vunpack.c.l.b16 %v449
    %v486 = vunpack.c.l.b16 %v450
    %v487 = vunpack.c.l.b16 %v451
    %v488 = vunpack.c.l.b16 %v452
    %v489 = vunpack.c.l.b16 %v453
    %v490 = vpack.c.b16 %v475, %v474
    %v491 = vpack.c.b16 %v477, %v476
    %v492 = vpack.c.b16 %v479, %v478
    %v493 = vpack.c.b16 %v481, %v480
    %v494 = vpack.c.b16 %v483, %v482
    %v495 = vpack.c.b16 %v485, %v484
    %v496 = vpack.c.b16 %v487, %v486
    %v497 = vpack.c.b16 %v489, %v488
    %506 = vmatpush.bf16.msra.mxu0 %v497
    %507 = vmatpush.bf16.msra.mxu0 %v496
    %508 = vmatpush.bf16.msra.mxu0 %v495
    %509 = vmatpush.bf16.msra.mxu0 %v494
    %510 = vmatpush.bf16.msra.mxu0 %v493
    %511 = vmatpush.bf16.msra.mxu0 %v492
    %512 = vmatpush.bf16.msra.mxu0 %v491
    %513 = vmatpush.bf16.msra.mxu0 %v490
    %514 = vmatmul.bf16.gmra.mxu0 %v437
    %v515 = vpop.f32.mrf.mxu0
    %v516 = vadd.f32 %v456, %v515
    %v517 = vpop.f32.mrf.mxu0
    %v518 = vadd.f32 %v456, %v517
    %519 = vdwg.mxu0
    %v520 = vpack.c.bf16 %v516, %v516
    %v521 = vpack.c.bf16 %v518, %v518
    %522 = vst [vmem:[#allocation11] sm:$0xf] %v520
    %523 = vst [vmem:[#allocation11 + $0x4] sm:$0xf] %v521
    // Predicated region
    $region82: #{tpu_custom_call.1} parent=1 // pred_check
      _
    $region83: #{tpu_custom_call.1} parent=1 // pred_check_branch
      %525 = sbr.rel (0) target = $region85
    $region84: #{tpu_custom_call.1} parent=1 // pred_region
      %527 = vsyncadd [#allocation4], 0
      %s528 = sshll.u32 [#allocation11], 4
      %s529 = int_to_ptr.vmem [resolvable:$true] %s528
      %s530 = sshll.u32 %s15, 4
      %s531 = int_to_ptr.hbm [resolvable:$true] %s530
      %536 = dma.vmem_to_hbm [thread:$0]  %s529, 128, %s531, [#allocation4], 64, 64, 4
    $region85: #{tpu_custom_call.1} parent=1 // pred_fallthru
      _
    // Predicated region
    $region86: #{tpu_custom_call.1} parent=1 // pred_check
      _
    $region87: #{tpu_custom_call.1} parent=1 // pred_check_branch
      %538 = sbr.rel (0) target = $region89
    $region88: #{tpu_custom_call.1} parent=1 // pred_region
      %540 = dma.done [#allocation4], 128
    $region89: #{tpu_custom_call.1} parent=1 // pred_fallthru
      _
    %541 = vsyncpa [#allocation3], 1
    %542 = vsyncpa [#allocation6], 1
    %543 = vsyncpa [#allocation9], 1
    %544 = vsyncpa [#allocation4], 1

// kernel: tpu_custom_call.1
$region0: #{tpu_custom_call.1}
  #allocation0 [shape = 'u32[]', space=smem, size = 0x4, offset = 0x4, fixed_abs, tag = 'smem constant byte address 0x4 - core index']
  #allocation1 [shape = 'u32[72,128]{1,0:T(1,128)}', space=vmem, size = 0x9000, scoped, tag = 'internal scratch']
  %s0 = inlined_call_operand.vmem [shape: bf16[16,8], index: 0, kind: input, shape index: {}]
  %s1 = inlined_call_operand.vmem [shape: bf16[16,16], index: 1, kind: input, shape index: {}]
  %s2 = inlined_call_operand.vmem [shape: bf16[16,12], index: 2, kind: input, shape index: {}]
  %s3 = inlined_call_operand.vmem [shape: bf16[16,4], index: 3, kind: input, shape index: {}]
  %s4 = inlined_call_operand.hbm [shape: bf16[8,128], index: 4, kind: input, shape index: {}]
  %s5 = inlined_call_operand.vmem [shape: bf16[16,128], index: 5, kind: input, shape index: {}]
  %s6 = inlined_call_operand.hbm [shape: bf16[12,128], index: 6, kind: input, shape index: {}]
  %s7 = inlined_call_operand.vmem [shape: bf16[4,128], index: 7, kind: input, shape index: {}]
  %s8 = inlined_call_operand.vmem [shape: f32[1,128], index: 8, kind: input, shape index: {}]
  %s9 = inlined_call_operand.hbm [shape: bf16[128,128], index: 9, kind: input, shape index: {}]
  %s10 = inlined_call_operand.vmem [shape: f32[1,128], index: 10, kind: input, shape index: {}]
  %s11 = inlined_call_operand.hbm [shape: bf16[128,128], index: 11, kind: input, shape index: {}]
  %s12 = inlined_call_operand.vmem [shape: f32[1,128], index: 12, kind: input, shape index: {}]
  %s13 = inlined_call_operand.hbm [shape: bf16[128,128], index: 13, kind: input, shape index: {}]
  %s14 = inlined_call_operand.vmem [shape: f32[1,128], index: 14, kind: input, shape index: {}]
  %s15 = inlined_call_operand.hbm [shape: bf16[16,128], index: 15, kind: output, shape index: {}]
  %s16 = sld [smem:[#allocation0]]
  $region90: #{tpu_custom_call.1} parent=0
    _
  %s18 = ssub.s32 1, %s16
  %s19 = scalar_select 0, %s18, %s16
  $region1: #{tpu_custom_call.1} parent=0
    #allocation2 [shape = 'u8[2048]{0}', space=vmem, size = 0x800, scoped, tag = 'input window, operand 4, single buffered']
    #allocation3 [shape = 's32[1]{0}', space=sflag, size = 0x4, scoped, tag = 'scoped memory for tpu_custom_call.1']
    #allocation4 [shape = 's32[1]{0}', space=sflag, size = 0x4, scoped, tag = 'scoped memory for tpu_custom_call.1']
    #allocation5 [shape = 'u8[4096]{0}', space=vmem, size = 0x1000, scoped, tag = 'input window, operand 6, single buffered']
    #allocation6 [shape = 's32[1]{0}', space=sflag, size = 0x4, scoped, tag = 'scoped memory for tpu_custom_call.1']
    #allocation7 [shape = 'u8[32768]{0}', space=vmem, size = 0x8000, scoped, tag = 'input window, operand 9, single buffered']
    #allocation8 [shape = 'u8[32768]{0}', space=vmem, size = 0x8000, scoped, tag = 'input window, operand 11, single buffered']
    #allocation9 [shape = 's32[1]{0}', space=sflag, size = 0x4, scoped, tag = 'scoped memory for tpu_custom_call.1']
    #allocation10 [shape = 'u8[32768]{0}', space=vmem, size = 0x8000, scoped, tag = 'input window, operand 13, single buffered']
    #allocation11 [shape = 'u8[4096]{0}', space=vmem, size = 0x1000, scoped, tag = 'output window, operand 0, single buffered']
    %20 = vsyncpa [#allocation3], 0
    %21 = vsyncpa [#allocation6], 0
    %22 = vsyncpa [#allocation9], 0
    %23 = vsyncpa [#allocation4], 0
    // Predicated region
    $region2: #{tpu_custom_call.1} parent=1 // pred_check
      _
    $region3: #{tpu_custom_call.1} parent=1 // pred_check_branch
      %25 = sbr.rel (0) target = $region5
    $region4: #{tpu_custom_call.1} parent=1 // pred_region
      _
    $region5: #{tpu_custom_call.1} parent=1 // pred_fallthru
      _
    // Predicated region
    $region6: #{tpu_custom_call.1} parent=1 // pred_check
      _
    $region7: #{tpu_custom_call.1} parent=1 // pred_check_branch
      %27 = sbr.rel (0) target = $region9
    $region8: #{tpu_custom_call.1} parent=1 // pred_region
      _
    $region9: #{tpu_custom_call.1} parent=1 // pred_fallthru
      _
    // Predicated region
    $region10: #{tpu_custom_call.1} parent=1 // pred_check
      _
    $region11: #{tpu_custom_call.1} parent=1 // pred_check_branch
      %29 = sbr.rel (0) target = $region13
    $region12: #{tpu_custom_call.1} parent=1 // pred_region
      _
    $region13: #{tpu_custom_call.1} parent=1 // pred_fallthru
      _
    // Predicated region
    $region14: #{tpu_custom_call.1} parent=1 // pred_check
      _
    $region15: #{tpu_custom_call.1} parent=1 // pred_check_branch
      %31 = sbr.rel (0) target = $region17
    $region16: #{tpu_custom_call.1} parent=1 // pred_region
      _
    $region17: #{tpu_custom_call.1} parent=1 // pred_fallthru
      _
    // Predicated region
    $region18: #{tpu_custom_call.1} parent=1 // pred_check
      _
    $region19: #{tpu_custom_call.1} parent=1 // pred_check_branch
      %33 = sbr.rel (0) target = $region21
    $region20: #{tpu_custom_call.1} parent=1 // pred_region
      %35 = vsyncadd [#allocation3], 0
      %s37 = sshll.u32 %s4, 4
      %s38 = int_to_ptr.hbm [resolvable:$true] %s37
      %s39 = sshll.u32 [#allocation2], 4
      %s40 = int_to_ptr.vmem [resolvable:$true] %s39
      %42 = dma.hbm_to_vmem [thread:$0]  %s38, 64, %s40, [#allocation3]
    $region21: #{tpu_custom_call.1} parent=1 // pred_fallthru
      _
    // Predicated region
    $region22: #{tpu_custom_call.1} parent=1 // pred_check
      _
    $region23: #{tpu_custom_call.1} parent=1 // pred_check_branch
      %44 = sbr.rel (0) target = $region25
    $region24: #{tpu_custom_call.1} parent=1 // pred_region
      _
    $region25: #{tpu_custom_call.1} parent=1 // pred_fallthru
      _
    // Predicated region
    $region26: #{tpu_custom_call.1} parent=1 // pred_check
      _
    $region27: #{tpu_custom_call.1} parent=1 // pred_check_branch
      %46 = sbr.rel (0) target = $region29
    $region28: #{tpu_custom_call.1} parent=1 // pred_region
      %48 = vsyncadd [#allocation6], 0
      %s49 = sshll.u32 %s6, 4
      %s50 = int_to_ptr.hbm [resolvable:$true] %s49
      %s51 = sshll.u32 [#allocation5], 4
      %s52 = int_to_ptr.vmem [resolvable:$true] %s51
      %57 = dma.hbm_to_vmem [thread:$0]  %s50, 128, %s52, [#allocation6], 64, 64, 4
    $region29: #{tpu_custom_call.1} parent=1 // pred_fallthru
      _
    // Predicated region
    $region30: #{tpu_custom_call.1} parent=1 // pred_check
      _
    $region31: #{tpu_custom_call.1} parent=1 // pred_check_branch
      %59 = sbr.rel (0) target = $region33
    $region32: #{tpu_custom_call.1} parent=1 // pred_region
      _
    $region33: #{tpu_custom_call.1} parent=1 // pred_fallthru
      _
    // Predicated region
    $region34: #{tpu_custom_call.1} parent=1 // pred_check
      _
    $region35: #{tpu_custom_call.1} parent=1 // pred_check_branch
      %61 = sbr.rel (0) target = $region37
    $region36: #{tpu_custom_call.1} parent=1 // pred_region
      _
    $region37: #{tpu_custom_call.1} parent=1 // pred_fallthru
      _
    // Predicated region
    $region38: #{tpu_custom_call.1} parent=1 // pred_check
      _
    $region39: #{tpu_custom_call.1} parent=1 // pred_check_branch
      %63 = sbr.rel (0) target = $region41
    $region40: #{tpu_custom_call.1} parent=1 // pred_region
      %65 = vsyncadd [#allocation6], 0
      %s66 = sshll.u32 %s9, 4
      %s67 = int_to_ptr.hbm [resolvable:$true] %s66
      %s68 = sshll.u32 [#allocation7], 4
      %s69 = int_to_ptr.vmem [resolvable:$true] %s68
      %74 = dma.hbm_to_vmem [thread:$0]  %s67, 1024, %s69, [#allocation6], 64, 64, 4
    $region41: #{tpu_custom_call.1} parent=1 // pred_fallthru
      _
    // Predicated region
    $region42: #{tpu_custom_call.1} parent=1 // pred_check
      _
    $region43: #{tpu_custom_call.1} parent=1 // pred_check_branch
      %76 = sbr.rel (0) target = $region45
    $region44: #{tpu_custom_call.1} parent=1 // pred_region
      _
    $region45: #{tpu_custom_call.1} parent=1 // pred_fallthru
      _
    // Predicated region
    $region46: #{tpu_custom_call.1} parent=1 // pred_check
      _
    $region47: #{tpu_custom_call.1} parent=1 // pred_check_branch
      %78 = sbr.rel (0) target = $region49
    $region48: #{tpu_custom_call.1} parent=1 // pred_region
      %80 = vsyncadd [#allocation9], 0
      %s81 = sshll.u32 %s11, 4
      %s82 = int_to_ptr.hbm [resolvable:$true] %s81
      %s83 = sshll.u32 [#allocation8], 4
      %s84 = int_to_ptr.vmem [resolvable:$true] %s83
      %89 = dma.hbm_to_vmem [thread:$0]  %s82, 1024, %s84, [#allocation9], 64, 64, 4
    $region49: #{tpu_custom_call.1} parent=1 // pred_fallthru
      _
    // Predicated region
    $region50: #{tpu_custom_call.1} parent=1 // pred_check
      _
    $region51: #{tpu_custom_call.1} parent=1 // pred_check_branch
      %91 = sbr.rel (0) target = $region53
    $region52: #{tpu_custom_call.1} parent=1 // pred_region
      _
    $region53: #{tpu_custom_call.1} parent=1 // pred_fallthru
      _
    // Predicated region
    $region54: #{tpu_custom_call.1} parent=1 // pred_check
      _
    $region55: #{tpu_custom_call.1} parent=1 // pred_check_branch
      %93 = sbr.rel (0) target = $region57
    $region56: #{tpu_custom_call.1} parent=1 // pred_region
      %95 = vsyncadd [#allocation9], 0
      %s96 = sshll.u32 %s13, 4
      %s97 = int_to_ptr.hbm [resolvable:$true] %s96
      %s98 = sshll.u32 [#allocation10], 4
      %s99 = int_to_ptr.vmem [resolvable:$true] %s98
      %104 = dma.hbm_to_vmem [thread:$0]  %s97, 1024, %s99, [#allocation9], 64, 64, 4
    $region57: #{tpu_custom_call.1} parent=1 // pred_fallthru
      _
    // Predicated region
    $region58: #{tpu_custom_call.1} parent=1 // pred_check
      _
    $region59: #{tpu_custom_call.1} parent=1 // pred_check_branch
      %106 = sbr.rel (0) target = $region61
    $region60: #{tpu_custom_call.1} parent=1 // pred_region
      _
    $region61: #{tpu_custom_call.1} parent=1 // pred_fallthru
      _
    // Predicated region
    $region62: #{tpu_custom_call.1} parent=1 // pred_check
      _
    $region63: #{tpu_custom_call.1} parent=1 // pred_check_branch
      %108 = sbr.rel (0) target = $region65
    $region64: #{tpu_custom_call.1} parent=1 // pred_region
      %110 = dma.done [#allocation3], 64
    $region65: #{tpu_custom_call.1} parent=1 // pred_fallthru
      _
    // Predicated region
    $region66: #{tpu_custom_call.1} parent=1 // pred_check
      _
    $region67: #{tpu_custom_call.1} parent=1 // pred_check_branch
      %112 = sbr.rel (0) target = $region69
    $region68: #{tpu_custom_call.1} parent=1 // pred_region
      %114 = dma.done [#allocation6], 128
    $region69: #{tpu_custom_call.1} parent=1 // pred_fallthru
      _
    // Predicated region
    $region70: #{tpu_custom_call.1} parent=1 // pred_check
      _
    $region71: #{tpu_custom_call.1} parent=1 // pred_check_branch
      %116 = sbr.rel (0) target = $region73
    $region72: #{tpu_custom_call.1} parent=1 // pred_region
      %118 = dma.done [#allocation6], 1024
    $region73: #{tpu_custom_call.1} parent=1 // pred_fallthru
      _
    // Predicated region
    $region74: #{tpu_custom_call.1} parent=1 // pred_check
      _
    $region75: #{tpu_custom_call.1} parent=1 // pred_check_branch
      %120 = sbr.rel (0) target = $region77
    $region76: #{tpu_custom_call.1} parent=1 // pred_region
      %122 = dma.done [#allocation9], 1024
    $region77: #{tpu_custom_call.1} parent=1 // pred_fallthru
      _
    // Predicated region
    $region78: #{tpu_custom_call.1} parent=1 // pred_check
      _
    $region79: #{tpu_custom_call.1} parent=1 // pred_check_branch
      %124 = sbr.rel (0) target = $region81
    $region80: #{tpu_custom_call.1} parent=1 // pred_region
      %126 = dma.done [#allocation9], 1024
    $region81: #{tpu_custom_call.1} parent=1 // pred_fallthru
      _
    %v128 = vld [vmem:[%s0] sm:$0xf]
    %v129 = vld [vmem:[%s0 + $0x4] sm:$0xf]
    %v130 = vld [vmem:[#allocation2] sm:$0xf]
    %v131 = vld [vmem:[%s1] sm:$0xf]
    %v132 = vld [vmem:[%s1 + $0x4] sm:$0xf]
    %v133 = vld [vmem:[%s5] sm:$0xf]
    %v134 = vld [vmem:[%s5 + $0x4] sm:$0xf]
    %v137 = vunpack.c.l.b16 %v131
    %v138 = vunpack.c.l.b16 %v132
    %v139 = vpack.c.b16 %v138, %v137
    %v142 = vunpack.c.l.b16 %v133
    %v143 = vunpack.c.l.b16 %v134
    %v144 = vpack.c.b16 %v143, %v142
    %vm146 = vcmask 130048
    %v148 = vsel %vm146, %v139, 0
    %150 = vmatpush.bf16.msra.mxu0 0
    %151 = vmatpush.bf16.msra.mxu0 0
    %152 = vmatpush.bf16.msra.mxu0 0
    %153 = vmatpush.bf16.msra.mxu0 0
    %154 = vmatpush.bf16.msra.mxu0 0
    %155 = vmatpush.bf16.msra.mxu0 0
    %156 = vmatpush.bf16.msra.mxu0 0
    %157 = vmatpush.bf16.msra.mxu0 %v144
    %158 = vmatmul.bf16.gmra.mxu0 %v148
    %v159 = vpop.f32.mrf.mxu0
    %v160 = vadd.f32 0.0, %v159
    %v161 = vpop.f32.mrf.mxu0
    %v162 = vadd.f32 0.0, %v161
    %163 = vdwg.mxu0
    %v166 = vunpack.c.l.b16 %v128
    %v167 = vunpack.c.l.b16 %v129
    %v168 = vpack.c.b16 %v167, %v166
    %vm169 = vcmask 64512
    %v171 = vsel %vm169, %v168, 0
    %vm173 = vcmask 1043456
    %v175 = vsel %vm173, %v130, 0
    %177 = vmatpush.bf16.msra.mxu0 0
    %178 = vmatpush.bf16.msra.mxu0 0
    %179 = vmatpush.bf16.msra.mxu0 0
    %180 = vmatpush.bf16.msra.mxu0 0
    %181 = vmatpush.bf16.msra.mxu0 0
    %182 = vmatpush.bf16.msra.mxu0 0
    %183 = vmatpush.bf16.msra.mxu0 0
    %184 = vmatpush.bf16.msra.mxu0 %v175
    %185 = vmatmul.bf16.gmra.mxu0 %v171
    %v186 = vpop.f32.mrf.mxu0
    %v187 = vadd.f32 %v160, %v186
    %v188 = vpop.f32.mrf.mxu0
    %v189 = vadd.f32 %v162, %v188
    %190 = vdwg.mxu0
    %v191 = vld [vmem:[%s2] sm:$0xf]
    %v192 = vld [vmem:[%s2 + $0x4] sm:$0xf]
    %v193 = vld [vmem:[#allocation5] sm:$0xf]
    %v194 = vld [vmem:[#allocation5 + $0x4] sm:$0x3]
    %v197 = vunpack.c.l.b16 %v191
    %v198 = vunpack.c.l.b16 %v192
    %v199 = vpack.c.b16 %v198, %v197
    %v202 = vunpack.c.l.b16 %v193
    %v203 = vunpack.c.l.b16 %v194
    %v204 = vpack.c.b16 %v203, %v202
    %vm205 = vcmask 97280
    %v207 = vsel %vm205, %v199, 0
    %vm209 = vcmask 1045504
    %v211 = vsel %vm209, %v204, 0
    %213 = vmatpush.bf16.msra.mxu0 0
    %214 = vmatpush.bf16.msra.mxu0 0
    %215 = vmatpush.bf16.msra.mxu0 0
    %216 = vmatpush.bf16.msra.mxu0 0
    %217 = vmatpush.bf16.msra.mxu0 0
    %218 = vmatpush.bf16.msra.mxu0 0
    %219 = vmatpush.bf16.msra.mxu0 0
    %220 = vmatpush.bf16.msra.mxu0 %v211
    %221 = vmatmul.bf16.gmra.mxu0 %v207
    %v222 = vpop.f32.mrf.mxu0
    %v223 = vadd.f32 0.0, %v222
    %v224 = vpop.f32.mrf.mxu0
    %v225 = vadd.f32 0.0, %v224
    %226 = vdwg.mxu0
    %v227 = vadd.f32 %v187, %v223
    %v228 = vadd.f32 %v189, %v225
    %v229 = vld [vmem:[%s3] sm:$0xf]
    %v230 = vld [vmem:[%s3 + $0x4] sm:$0xf]
    %v231 = vld [vmem:[%s7] sm:$0x3]
    %v234 = vunpack.c.l.b16 %v229
    %v235 = vunpack.c.l.b16 %v230
    %v236 = vpack.c.b16 %v235, %v234
    %vm237 = vcmask 31744
    %v239 = vsel %vm237, %v236, 0
    %vm241 = vcmask 1041408
    %v243 = vsel %vm241, %v231, 0
    %245 = vmatpush.bf16.msra.mxu0 0
    %246 = vmatpush.bf16.msra.mxu0 0
    %247 = vmatpush.bf16.msra.mxu0 0
    %248 = vmatpush.bf16.msra.mxu0 0
    %249 = vmatpush.bf16.msra.mxu0 0
    %250 = vmatpush.bf16.msra.mxu0 0
    %251 = vmatpush.bf16.msra.mxu0 0
    %252 = vmatpush.bf16.msra.mxu0 %v243
    %253 = vmatmul.bf16.gmra.mxu0 %v239
    %v254 = vpop.f32.mrf.mxu0
    %v255 = vadd.f32 0.0, %v254
    %v256 = vpop.f32.mrf.mxu0
    %v257 = vadd.f32 0.0, %v256
    %258 = vdwg.mxu0
    %v259 = vadd.f32 %v227, %v255
    %v260 = vadd.f32 %v228, %v257
    %v261 = vld [vmem:[%s8] sm:$0x1]
    %v263 = vperm.slane %v261, 0
    %v265 = vadd.f32 %v259, %v263
    %v266 = vadd.f32 %v260, %v263
    %v267 = vpack.c.bf16 %v266, %v265
    %v268 = vld [vmem:[#allocation7] sm:$0xf]
    %v269 = vld [vmem:[#allocation7 + $0x4] sm:$0xf]
    %v270 = vld [vmem:[#allocation7 + $0x8] sm:$0xf]
    %v271 = vld [vmem:[#allocation7 + $0xc] sm:$0xf]
    %v272 = vld [vmem:[#allocation7 + $0x10] sm:$0xf]
    %v273 = vld [vmem:[#allocation7 + $0x14] sm:$0xf]
    %v274 = vld [vmem:[#allocation7 + $0x18] sm:$0xf]
    %v275 = vld [vmem:[#allocation7 + $0x1c] sm:$0xf]
    %v276 = vld [vmem:[#allocation7 + $0x20] sm:$0xf]
    %v277 = vld [vmem:[#allocation7 + $0x24] sm:$0xf]
    %v278 = vld [vmem:[#allocation7 + $0x28] sm:$0xf]
    %v279 = vld [vmem:[#allocation7 + $0x2c] sm:$0xf]
    %v280 = vld [vmem:[#allocation7 + $0x30] sm:$0xf]
    %v281 = vld [vmem:[#allocation7 + $0x34] sm:$0xf]
    %v282 = vld [vmem:[#allocation7 + $0x38] sm:$0xf]
    %v283 = vld [vmem:[#allocation7 + $0x3c] sm:$0xf]
    %v284 = vld [vmem:[%s10] sm:$0x1]
    %v286 = vperm.slane %v284, 0
    %v304 = vunpack.c.l.b16 %v268
    %v305 = vunpack.c.l.b16 %v269
    %v306 = vunpack.c.l.b16 %v270
    %v307 = vunpack.c.l.b16 %v271
    %v308 = vunpack.c.l.b16 %v272
    %v309 = vunpack.c.l.b16 %v273
    %v310 = vunpack.c.l.b16 %v274
    %v311 = vunpack.c.l.b16 %v275
    %v312 = vunpack.c.l.b16 %v276
    %v313 = vunpack.c.l.b16 %v277
    %v314 = vunpack.c.l.b16 %v278
    %v315 = vunpack.c.l.b16 %v279
    %v316 = vunpack.c.l.b16 %v280
    %v317 = vunpack.c.l.b16 %v281
    %v318 = vunpack.c.l.b16 %v282
    %v319 = vunpack.c.l.b16 %v283
    %v320 = vpack.c.b16 %v305, %v304
    %v321 = vpack.c.b16 %v307, %v306
    %v322 = vpack.c.b16 %v309, %v308
    %v323 = vpack.c.b16 %v311, %v310
    %v324 = vpack.c.b16 %v313, %v312
    %v325 = vpack.c.b16 %v315, %v314
    %v326 = vpack.c.b16 %v317, %v316
    %v327 = vpack.c.b16 %v319, %v318
    %336 = vmatpush.bf16.msra.mxu0 %v327
    %337 = vmatpush.bf16.msra.mxu0 %v326
    %338 = vmatpush.bf16.msra.mxu0 %v325
    %339 = vmatpush.bf16.msra.mxu0 %v324
    %340 = vmatpush.bf16.msra.mxu0 %v323
    %341 = vmatpush.bf16.msra.mxu0 %v322
    %342 = vmatpush.bf16.msra.mxu0 %v321
    %343 = vmatpush.bf16.msra.mxu0 %v320
    %344 = vmatmul.bf16.gmra.mxu0 %v267
    %v345 = vpop.f32.mrf.mxu0
    %v346 = vadd.f32 %v286, %v345
    %v347 = vpop.f32.mrf.mxu0
    %v348 = vadd.f32 %v286, %v347
    %349 = vdwg.mxu0
    %v350 = vmax.f32 %v346, 0.0
    %v351 = vmax.f32 %v348, 0.0
    %v352 = vpack.c.bf16 %v351, %v350
    %v353 = vld [vmem:[#allocation8] sm:$0xf]
    %v354 = vld [vmem:[#allocation8 + $0x4] sm:$0xf]
    %v355 = vld [vmem:[#allocation8 + $0x8] sm:$0xf]
    %v356 = vld [vmem:[#allocation8 + $0xc] sm:$0xf]
    %v357 = vld [vmem:[#allocation8 + $0x10] sm:$0xf]
    %v358 = vld [vmem:[#allocation8 + $0x14] sm:$0xf]
    %v359 = vld [vmem:[#allocation8 + $0x18] sm:$0xf]
    %v360 = vld [vmem:[#allocation8 + $0x1c] sm:$0xf]
    %v361 = vld [vmem:[#allocation8 + $0x20] sm:$0xf]
    %v362 = vld [vmem:[#allocation8 + $0x24] sm:$0xf]
    %v363 = vld [vmem:[#allocation8 + $0x28] sm:$0xf]
    %v364 = vld [vmem:[#allocation8 + $0x2c] sm:$0xf]
    %v365 = vld [vmem:[#allocation8 + $0x30] sm:$0xf]
    %v366 = vld [vmem:[#allocation8 + $0x34] sm:$0xf]
    %v367 = vld [vmem:[#allocation8 + $0x38] sm:$0xf]
    %v368 = vld [vmem:[#allocation8 + $0x3c] sm:$0xf]
    %v369 = vld [vmem:[%s12] sm:$0x1]
    %v371 = vperm.slane %v369, 0
    %v389 = vunpack.c.l.b16 %v353
    %v390 = vunpack.c.l.b16 %v354
    %v391 = vunpack.c.l.b16 %v355
    %v392 = vunpack.c.l.b16 %v356
    %v393 = vunpack.c.l.b16 %v357
    %v394 = vunpack.c.l.b16 %v358
    %v395 = vunpack.c.l.b16 %v359
    %v396 = vunpack.c.l.b16 %v360
    %v397 = vunpack.c.l.b16 %v361
    %v398 = vunpack.c.l.b16 %v362
    %v399 = vunpack.c.l.b16 %v363
    %v400 = vunpack.c.l.b16 %v364
    %v401 = vunpack.c.l.b16 %v365
    %v402 = vunpack.c.l.b16 %v366
    %v403 = vunpack.c.l.b16 %v367
    %v404 = vunpack.c.l.b16 %v368
    %v405 = vpack.c.b16 %v390, %v389
    %v406 = vpack.c.b16 %v392, %v391
    %v407 = vpack.c.b16 %v394, %v393
    %v408 = vpack.c.b16 %v396, %v395
    %v409 = vpack.c.b16 %v398, %v397
    %v410 = vpack.c.b16 %v400, %v399
    %v411 = vpack.c.b16 %v402, %v401
    %v412 = vpack.c.b16 %v404, %v403
    %421 = vmatpush.bf16.msra.mxu0 %v412
    %422 = vmatpush.bf16.msra.mxu0 %v411
    %423 = vmatpush.bf16.msra.mxu0 %v410
    %424 = vmatpush.bf16.msra.mxu0 %v409
    %425 = vmatpush.bf16.msra.mxu0 %v408
    %426 = vmatpush.bf16.msra.mxu0 %v407
    %427 = vmatpush.bf16.msra.mxu0 %v406
    %428 = vmatpush.bf16.msra.mxu0 %v405
    %429 = vmatmul.bf16.gmra.mxu0 %v352
    %v430 = vpop.f32.mrf.mxu0
    %v431 = vadd.f32 %v371, %v430
    %v432 = vpop.f32.mrf.mxu0
    %v433 = vadd.f32 %v371, %v432
    %434 = vdwg.mxu0
    %v435 = vmax.f32 %v431, 0.0
    %v436 = vmax.f32 %v433, 0.0
    %v437 = vpack.c.bf16 %v436, %v435
    %v438 = vld [vmem:[#allocation10] sm:$0xf]
    %v439 = vld [vmem:[#allocation10 + $0x4] sm:$0xf]
    %v440 = vld [vmem:[#allocation10 + $0x8] sm:$0xf]
    %v441 = vld [vmem:[#allocation10 + $0xc] sm:$0xf]
    %v442 = vld [vmem:[#allocation10 + $0x10] sm:$0xf]
    %v443 = vld [vmem:[#allocation10 + $0x14] sm:$0xf]
    %v444 = vld [vmem:[#allocation10 + $0x18] sm:$0xf]
    %v445 = vld [vmem:[#allocation10 + $0x1c] sm:$0xf]
    %v446 = vld [vmem:[#allocation10 + $0x20] sm:$0xf]
    %v447 = vld [vmem:[#allocation10 + $0x24] sm:$0xf]
    %v448 = vld [vmem:[#allocation10 + $0x28] sm:$0xf]
    %v449 = vld [vmem:[#allocation10 + $0x2c] sm:$0xf]
    %v450 = vld [vmem:[#allocation10 + $0x30] sm:$0xf]
    %v451 = vld [vmem:[#allocation10 + $0x34] sm:$0xf]
    %v452 = vld [vmem:[#allocation10 + $0x38] sm:$0xf]
    %v453 = vld [vmem:[#allocation10 + $0x3c] sm:$0xf]
    %v454 = vld [vmem:[%s14] sm:$0x1]
    %v456 = vperm.slane %v454, 0
    %v474 = vunpack.c.l.b16 %v438
    %v475 = vunpack.c.l.b16 %v439
    %v476 = vunpack.c.l.b16 %v440
    %v477 = vunpack.c.l.b16 %v441
    %v478 = vunpack.c.l.b16 %v442
    %v479 = vunpack.c.l.b16 %v443
    %v480 = vunpack.c.l.b16 %v444
    %v481 = vunpack.c.l.b16 %v445
    %v482 = vunpack.c.l.b16 %v446
    %v483 = vunpack.c.l.b16 %v447
    %v484 = vunpack.c.l.b16 %v448
    %v485 = vunpack.c.l.b16 %v449
    %v486 = vunpack.c.l.b16 %v450
    %v487 = vunpack.c.l.b16 %v451
    %v488 = vunpack.c.l.b16 %v452
    %v489 = vunpack.c.l.b16 %v453
    %v490 = vpack.c.b16 %v475, %v474
    %v491 = vpack.c.b16 %v477, %v476
    %v492 = vpack.c.b16 %v479, %v478
    %v493 = vpack.c.b16 %v481, %v480
    %v494 = vpack.c.b16 %v483, %v482
    %v495 = vpack.c.b16 %v485, %v484
    %v496 = vpack.c.b16 %v487, %v486
    %v497 = vpack.c.b16 %v489, %v488
    %506 = vmatpush.bf16.msra.mxu0 %v497
    %507 = vmatpush.bf16.msra.mxu0 %v496
    %508 = vmatpush.bf16.msra.mxu0 %v495
    %509 = vmatpush.bf16.msra.mxu0 %v494
    %510 = vmatpush.bf16.msra.mxu0 %v493
    %511 = vmatpush.bf16.msra.mxu0 %v492
    %512 = vmatpush.bf16.msra.mxu0 %v491
    %513 = vmatpush.bf16.msra.mxu0 %v490
    %514 = vmatmul.bf16.gmra.mxu0 %v437
    %v515 = vpop.f32.mrf.mxu0
    %v516 = vadd.f32 %v456, %v515
    %v517 = vpop.f32.mrf.mxu0
    %v518 = vadd.f32 %v456, %v517
    %519 = vdwg.mxu0
    %v520 = vpack.c.bf16 %v516, %v516
    %v521 = vpack.c.bf16 %v518, %v518
    %522 = vst [vmem:[#allocation11] sm:$0xf] %v520
    %523 = vst [vmem:[#allocation11 + $0x4] sm:$0xf] %v521
    // Predicated region
    $region82: #{tpu_custom_call.1} parent=1 // pred_check
      _
    $region83: #{tpu_custom_call.1} parent=1 // pred_check_branch
      %525 = sbr.rel (0) target = $region85
    $region84: #{tpu_custom_call.1} parent=1 // pred_region
      %527 = vsyncadd [#allocation4], 0
      %s528 = sshll.u32 [#allocation11], 4
      %s529 = int_to_ptr.vmem [resolvable:$true] %s528
      %s530 = sshll.u32 %s15, 4
      %s531 = int_to_ptr.hbm [resolvable:$true] %s530
      %536 = dma.vmem_to_hbm [thread:$0]  %s529, 128, %s531, [#allocation4], 64, 64, 4
    $region85: #{tpu_custom_call.1} parent=1 // pred_fallthru
      _
    // Predicated region
    $region86: #{tpu_custom_call.1} parent=1 // pred_check
      _
    $region87: #{tpu_custom_call.1} parent=1 // pred_check_branch
      %538 = sbr.rel (0) target = $region89
    $region88: #{tpu_custom_call.1} parent=1 // pred_region
      %540 = dma.done [#allocation4], 128
    $region89: #{tpu_custom_call.1} parent=1 // pred_fallthru
      _
    %541 = vsyncpa [#allocation3], 1
    %542 = vsyncpa [#allocation6], 1
    %543 = vsyncpa [#allocation9], 1
    %544 = vsyncpa [#allocation4], 1

</llo_original>
